<compile_context>
chip_gen: v7x
topology: tpu7x:2x2x1
jax: 0.10.0
libtpu: 0.0.40
codegen_flags: <defaults>
</compile_context>

<pallas_src>
import jax
import jax.numpy as jnp
from jax.experimental import pallas as pl
from jax.experimental.pallas import tpu as pltpu


# ----------------------------------------------------------------------------
# Kernel 1/2: fused conv(5x5) + bias + ReLU + 2x2 maxpool over a batch tile.
# One matmul per grid step; pooling = max of 4 lane-aligned slabs.
# ----------------------------------------------------------------------------
def _conv_relu_pool_kernel(p_ref, w_ref, b_ref, o_ref):
    # p_ref: (K, 4*Bt*Mp_pad) bf16  im2col patches, lanes ordered (pool_slab, b, m)
    # w_ref: (O, K)           bf16  conv weight reshaped (O, C*kh*kw)
    # b_ref: (O, 1)           f32   bias
    # o_ref: (O, Bt*Mp_pad)   f32   pooled output, lanes ordered (b, m)
    slab = o_ref.shape[-1]                      # Bt * Mp_pad, multiple of 128
    acc = jnp.dot(w_ref[...], p_ref[...],
                  preferred_element_type=jnp.float32)          # (O, 4*slab)
    acc = jnp.maximum(acc + b_ref[...], 0.0)                   # bias + ReLU
    pooled = jnp.maximum(
        jnp.maximum(acc[:, 0 * slab:1 * slab], acc[:, 1 * slab:2 * slab]),
        jnp.maximum(acc[:, 2 * slab:3 * slab], acc[:, 3 * slab:4 * slab]))
    o_ref[...] = pooled.astype(o_ref.dtype)


def conv_relu_pool(x, w, b, *, bt_cap=64):
    """Fused Conv2d(k=5, stride=1, valid) + ReLU + MaxPool2d(2, 2).

    x: (B, C, H, W) NCHW, w: (O, C, 5, 5), b: (O,).  Returns (B, O, Hp, Wp) f32.
    bt_cap: images per grid step.  64 keeps double-buffered blocks well under
    v7x's 64 MiB VMEM; on v6e this can be raised to 128-256.
    """
    B, C, H, W = x.shape
    O, C2, k, k2 = w.shape
    assert C == C2 and k == k2 == 5
    Ho, Wo = H - k + 1, W - k + 1
    assert Ho % 2 == 0 and Wo % 2 == 0, "2x2/2 maxpool needs even conv output dims"
    Hp, Wp = Ho // 2, Wo // 2
    Mp = Hp * Wp
    Mp_pad = ((Mp + 127) // 128) * 128          # lane-dense: 196->256, 25->128
    K = C * k * k

    Bt = min(B, bt_cap)
    G = pl.cdiv(B, Bt)
    B_pad = G * Bt
    if B_pad != B:
        x = jnp.pad(x, ((0, B_pad - B), (0, 0), (0, 0), (0, 0)))

    # im2col directly in the kernel layout (single 8-D transpose + zero pad).
    # K ordering is (C, kh, kw), C slowest -> matches PyTorch w.reshape(O, C*kh*kw).
    cols = [x[:, :, ki:ki + Ho, kj:kj + Wo] for ki in range(k) for kj in range(k)]
    p = jnp.stack(cols, axis=2)                           # (B_pad, C, 25, Ho, Wo)
    p = p.reshape(G, Bt, C, k * k, Hp, 2, Wp, 2)          # split batch tile + pool offsets
    p = p.transpose(0, 2, 3, 5, 7, 1, 4, 6)               # (G, C, 25, dy, dx, Bt, Hp, Wp)
    p = p.reshape(G, K, 4, Bt, Mp)
    p = jnp.pad(p, ((0, 0), (0, 0), (0, 0), (0, 0), (0, Mp_pad - Mp)))
    p = p.reshape(G, K, 4 * Bt * Mp_pad).astype(jnp.bfloat16)

    w2d = w.reshape(O, K).astype(jnp.bfloat16)
    b2d = b.reshape(O, 1).astype(jnp.float32)

    slab = Bt * Mp_pad
    out = pl.pallas_call(
        _conv_relu_pool_kernel,
        out_shape=jax.ShapeDtypeStruct((G, O, slab), jnp.float32),
        grid=(G,),
        in_specs=[
            pl.BlockSpec((None, K, 4 * slab), lambda g: (g, 0, 0)),
            pl.BlockSpec((O, K), lambda g: (0, 0)),
            pl.BlockSpec((O, 1), lambda g: (0, 0)),
        ],
        out_specs=pl.BlockSpec((None, O, slab), lambda g: (g, 0, 0)),
        compiler_params=pltpu.CompilerParams(
            dimension_semantics=("parallel",),
            vmem_limit_bytes=48 * 1024 * 1024),
    )(p, w2d, b2d)

    out = out.reshape(G, O, Bt, Mp_pad).transpose(0, 2, 1, 3)   # (G, Bt, O, Mp_pad)
    out = out.reshape(B_pad, O, Mp_pad)[:B, :, :Mp]             # drop batch+lane padding
    return out.reshape(B, O, Hp, Wp)                            # NCHW


# ----------------------------------------------------------------------------
# Kernel 3: fused fc1 + ReLU + fc2 + ReLU + fc3.  Weights stay VMEM-resident
# across grid steps; intermediates never touch HBM; all N dims padded to 128.
# ----------------------------------------------------------------------------
def _fc_stack_kernel(x_ref, w1_ref, b1_ref, w2_ref, b2_ref, w3_ref, b3_ref, o_ref):
    h = jnp.dot(x_ref[...], w1_ref[...], preferred_element_type=jnp.float32)
    h = jnp.maximum(h + b1_ref[...], 0.0).astype(jnp.bfloat16)
    h = jnp.dot(h, w2_ref[...], preferred_element_type=jnp.float32)
    h = jnp.maximum(h + b2_ref[...], 0.0).astype(jnp.bfloat16)
    h = jnp.dot(h, w3_ref[...], preferred_element_type=jnp.float32)
    o_ref[...] = (h + b3_ref[...]).astype(o_ref.dtype)


def fc_stack(x, w1, b1, w2, b2, w3, b3, *, bt_cap=256):
    """y = fc3(relu(fc2(relu(fc1(x))))). x: (B, 400); PyTorch Linear weights (out, in)."""
    B, Kin = x.shape
    n_out = w3.shape[0]
    NP = 128                                     # padded lane width for all FC N dims

    Bt = min(B, bt_cap)
    G = pl.cdiv(B, Bt)
    B_pad = G * Bt
    if B_pad != B:
        x = jnp.pad(x, ((0, B_pad - B), (0, 0)))

    def pad_wT(wmat, rows, cols):                # (out,in) -> (in,out), zero-pad, bf16
        wt = wmat.T
        return jnp.pad(wt, ((0, rows - wt.shape[0]),
                            (0, cols - wt.shape[1]))).astype(jnp.bfloat16)

    def pad_b(bvec, cols):
        return jnp.pad(bvec, (0, cols - bvec.shape[0])).reshape(1, cols).astype(jnp.float32)

    w1p, b1p = pad_wT(w1, Kin, NP), pad_b(b1, NP)
    w2p, b2p = pad_wT(w2, NP, NP), pad_b(b2, NP)
    w3p, b3p = pad_wT(w3, NP, NP), pad_b(b3, NP)

    out = pl.pallas_call(
        _fc_stack_kernel,
        out_shape=jax.ShapeDtypeStruct((B_pad, NP), jnp.float32),
        grid=(G,),
        in_specs=[
            pl.BlockSpec((Bt, Kin), lambda i: (i, 0)),
            pl.BlockSpec((Kin, NP), lambda i: (0, 0)),
            pl.BlockSpec((1, NP), lambda i: (0, 0)),
            pl.BlockSpec((NP, NP), lambda i: (0, 0)),
            pl.BlockSpec((1, NP), lambda i: (0, 0)),
            pl.BlockSpec((NP, NP), lambda i: (0, 0)),
            pl.BlockSpec((1, NP), lambda i: (0, 0)),
        ],
        out_specs=pl.BlockSpec((Bt, NP), lambda i: (i, 0)),
        compiler_params=pltpu.CompilerParams(
            dimension_semantics=("parallel",)),
    )(x.astype(jnp.bfloat16), w1p, b1p, w2p, b2p, w3p, b3p)
    return out[:B, :n_out]


# ----------------------------------------------------------------------------
# SimpleCNN parameters + forward
# ----------------------------------------------------------------------------
def init_params(key):
    ks = jax.random.split(key, 10)

    def unif(k, shape, fan_in):
        bound = 1.0 / jnp.sqrt(fan_in)
        return jax.random.uniform(k, shape, jnp.float32, -bound, bound)

    return {
        "conv1_w": unif(ks[0], (6, 3, 5, 5), 3 * 5 * 5),
        "conv1_b": unif(ks[1], (6,), 3 * 5 * 5),
        "conv2_w": unif(ks[2], (16, 6, 5, 5), 6 * 5 * 5),
        "conv2_b": unif(ks[3], (16,), 6 * 5 * 5),
        "fc1_w": unif(ks[4], (120, 400), 400),
        "fc1_b": unif(ks[5], (120,), 400),
        "fc2_w": unif(ks[6], (84, 120), 120),
        "fc2_b": unif(ks[7], (84,), 120),
        "fc3_w": unif(ks[8], (10, 84), 84),
        "fc3_b": unif(ks[9], (10,), 84),
    }


@jax.jit
def simple_cnn_forward(params, x):
    # x: (B, 3, 32, 32) NCHW float32
    a = conv_relu_pool(x, params["conv1_w"], params["conv1_b"])   # (B, 6, 14, 14)
    a = conv_relu_pool(a, params["conv2_w"], params["conv2_b"])   # (B, 16, 5, 5)
    a = a.reshape(a.shape[0], -1)                                 # (B, 400), PyTorch view order
    return fc_stack(a,
                    params["fc1_w"], params["fc1_b"],
                    params["fc2_w"], params["fc2_b"],
                    params["fc3_w"], params["fc3_b"])             # (B, 10) f32


if __name__ == "__main__":
    key = jax.random.PRNGKey(0)
    pkey, xkey = jax.random.split(key)
    params = init_params(pkey)
    # Forward implies 32x32 spatial input (LeNet on CIFAR-sized images).
    x = jax.random.normal(xkey, (2, 3, 32, 32), dtype=jnp.float32)

    out = simple_cnn_forward(params, x)
    out = jax.block_until_ready(out)

    assert out.shape == (2, 10), out.shape
    assert bool(jnp.all(jnp.isfinite(out)))
    print("KERNEL_OK")
</pallas_src>

<mosaic_0001>
module attributes {stable_mosaic.version = 11 : i64} {
  func.func @_conv_relu_pool_kernel(%arg0: i32, %arg1: memref<1x75x2048xbf16, #tpu.memory_space<vmem>>, %arg2: memref<6x75xbf16, #tpu.memory_space<vmem>>, %arg3: memref<6x1xf32, #tpu.memory_space<vmem>>, %arg4: memref<1x6x512xf32, #tpu.memory_space<vmem>>) attributes {dimension_semantics = [#tpu.dimension_semantics<parallel>], iteration_bounds = array<i64: 1>, scalar_prefetch = 0 : i64, scratch_operands = 0 : i64, tpu.core_type = #tpu.core_type<tc>, window_params = [{transform_indices = @transform_0, window_bounds = array<i64: 1, 75, 2048>}, {pipeline_mode = #tpu.pipeline_mode<synchronous>, transform_indices = @transform_1, window_bounds = array<i64: 6, 75>}, {pipeline_mode = #tpu.pipeline_mode<synchronous>, transform_indices = @transform_2, window_bounds = array<i64: 6, 1>}, {transform_indices = @transform_3, window_bounds = array<i64: 1, 6, 512>}]} {
    %c0 = arith.constant 0 : index
    %c0_0 = arith.constant 0 : index
    %0 = vector.load %arg2[%c0, %c0_0] : memref<6x75xbf16, #tpu.memory_space<vmem>>, vector<6x75xbf16>
    %c0_1 = arith.constant 0 : index
    %c0_2 = arith.constant 0 : index
    %c0_3 = arith.constant 0 : index
    %1 = vector.load %arg1[%c0_1, %c0_2, %c0_3] : memref<1x75x2048xbf16, #tpu.memory_space<vmem>>, vector<1x75x2048xbf16>
    %2 = vector.shape_cast %1 : vector<1x75x2048xbf16> to vector<75x2048xbf16>
    %cst = arith.constant dense<0.000000e+00> : vector<6x2048xf32>
    %3 = tpu.matmul %0, %2, %cst {dimension_numbers = #tpu.dot_dimension_numbers<[1], [0], [0], [1], [0, 0, 1, 1], [], []>} : vector<6x75xbf16>, vector<75x2048xbf16>, vector<6x2048xf32> -> vector<6x2048xf32>
    %c0_4 = arith.constant 0 : index
    %c0_5 = arith.constant 0 : index
    %4 = vector.load %arg3[%c0_4, %c0_5] : memref<6x1xf32, #tpu.memory_space<vmem>>, vector<6x1xf32>
    %5 = vector.broadcast %4 : vector<6x1xf32> to vector<6x2048xf32>
    %6 = arith.addf %3, %5 : vector<6x2048xf32>
    %cst_6 = arith.constant 0.000000e+00 : f32
    %7 = vector.broadcast %cst_6 : f32 to vector<6x2048xf32>
    %8 = arith.maximumf %6, %7 : vector<6x2048xf32>
    %9 = vector.extract_strided_slice %8 {offsets = [0, 0], sizes = [6, 512], strides = [1, 1]} : vector<6x2048xf32> to vector<6x512xf32>
    %10 = vector.extract_strided_slice %8 {offsets = [0, 512], sizes = [6, 512], strides = [1, 1]} : vector<6x2048xf32> to vector<6x512xf32>
    %11 = arith.maximumf %9, %10 : vector<6x512xf32>
    %12 = vector.extract_strided_slice %8 {offsets = [0, 1024], sizes = [6, 512], strides = [1, 1]} : vector<6x2048xf32> to vector<6x512xf32>
    %13 = vector.extract_strided_slice %8 {offsets = [0, 1536], sizes = [6, 512], strides = [1, 1]} : vector<6x2048xf32> to vector<6x512xf32>
    %14 = arith.maximumf %12, %13 : vector<6x512xf32>
    %15 = arith.maximumf %11, %14 : vector<6x512xf32>
    %c0_7 = arith.constant 0 : index
    %c0_8 = arith.constant 0 : index
    %c0_9 = arith.constant 0 : index
    %16 = vector.load %arg4[%c0_7, %c0_8, %c0_9] : memref<1x6x512xf32, #tpu.memory_space<vmem>>, vector<1x6x512xf32>
    %17 = vector.shape_cast %16 : vector<1x6x512xf32> to vector<6x512xf32>
    %18 = vector.shape_cast %15 : vector<6x512xf32> to vector<1x6x512xf32>
    tpu.vector_store %arg4[%c0_7, %c0_8, %c0_9], %18 {strides = array<i32>} : memref<1x6x512xf32, #tpu.memory_space<vmem>>, vector<1x6x512xf32>,
    return
  }
  func.func @transform_0(%arg0: i32) -> (i32, i32, i32) {
    %c0_i32 = arith.constant 0 : i32
    %c0_i32_0 = arith.constant 0 : i32
    %c0_i32_1 = arith.constant 0 : i32
    return %arg0, %c0_i32, %c0_i32_0 : i32, i32, i32
  }
  func.func @transform_1(%arg0: i32) -> (i32, i32) {
    %c0_i32 = arith.constant 0 : i32
    %c0_i32_0 = arith.constant 0 : i32
    %c0_i32_1 = arith.constant 0 : i32
    return %c0_i32, %c0_i32_0 : i32, i32
  }
  func.func @transform_2(%arg0: i32) -> (i32, i32) {
    %c0_i32 = arith.constant 0 : i32
    %c0_i32_0 = arith.constant 0 : i32
    %c0_i32_1 = arith.constant 0 : i32
    return %c0_i32, %c0_i32_0 : i32, i32
  }
  func.func @transform_3(%arg0: i32) -> (i32, i32, i32) {
    %c0_i32 = arith.constant 0 : i32
    %c0_i32_0 = arith.constant 0 : i32
    %c0_i32_1 = arith.constant 0 : i32
    return %arg0, %c0_i32, %c0_i32_0 : i32, i32, i32
  }
}

module attributes {stable_mosaic.version = 11 : i64} {
  func.func @_conv_relu_pool_kernel(%arg0: i32, %arg1: memref<1x150x1024xbf16, #tpu.memory_space<vmem>>, %arg2: memref<16x150xbf16, #tpu.memory_space<vmem>>, %arg3: memref<16x1xf32, #tpu.memory_space<vmem>>, %arg4: memref<1x16x256xf32, #tpu.memory_space<vmem>>) attributes {dimension_semantics = [#tpu.dimension_semantics<parallel>], iteration_bounds = array<i64: 1>, scalar_prefetch = 0 : i64, scratch_operands = 0 : i64, tpu.core_type = #tpu.core_type<tc>, window_params = [{transform_indices = @transform_0, window_bounds = array<i64: 1, 150, 1024>}, {pipeline_mode = #tpu.pipeline_mode<synchronous>, transform_indices = @transform_1, window_bounds = array<i64: 16, 150>}, {pipeline_mode = #tpu.pipeline_mode<synchronous>, transform_indices = @transform_2, window_bounds = array<i64: 16, 1>}, {transform_indices = @transform_3, window_bounds = array<i64: 1, 16, 256>}]} {
    %c0 = arith.constant 0 : index
    %c0_0 = arith.constant 0 : index
    %0 = vector.load %arg2[%c0, %c0_0] : memref<16x150xbf16, #tpu.memory_space<vmem>>, vector<16x150xbf16>
    %c0_1 = arith.constant 0 : index
    %c0_2 = arith.constant 0 : index
    %c0_3 = arith.constant 0 : index
    %1 = vector.load %arg1[%c0_1, %c0_2, %c0_3] : memref<1x150x1024xbf16, #tpu.memory_space<vmem>>, vector<1x150x1024xbf16>
    %2 = vector.shape_cast %1 : vector<1x150x1024xbf16> to vector<150x1024xbf16>
    %cst = arith.constant dense<0.000000e+00> : vector<16x1024xf32>
    %3 = tpu.matmul %0, %2, %cst {dimension_numbers = #tpu.dot_dimension_numbers<[1], [0], [0], [1], [0, 0, 1, 1], [], []>} : vector<16x150xbf16>, vector<150x1024xbf16>, vector<16x1024xf32> -> vector<16x1024xf32>
    %c0_4 = arith.constant 0 : index
    %c0_5 = arith.constant 0 : index
    %4 = vector.load %arg3[%c0_4, %c0_5] : memref<16x1xf32, #tpu.memory_space<vmem>>, vector<16x1xf32>
    %5 = vector.broadcast %4 : vector<16x1xf32> to vector<16x1024xf32>
    %6 = arith.addf %3, %5 : vector<16x1024xf32>
    %cst_6 = arith.constant 0.000000e+00 : f32
    %7 = vector.broadcast %cst_6 : f32 to vector<16x1024xf32>
    %8 = arith.maximumf %6, %7 : vector<16x1024xf32>
    %9 = vector.extract_strided_slice %8 {offsets = [0, 0], sizes = [16, 256], strides = [1, 1]} : vector<16x1024xf32> to vector<16x256xf32>
    %10 = vector.extract_strided_slice %8 {offsets = [0, 256], sizes = [16, 256], strides = [1, 1]} : vector<16x1024xf32> to vector<16x256xf32>
    %11 = arith.maximumf %9, %10 : vector<16x256xf32>
    %12 = vector.extract_strided_slice %8 {offsets = [0, 512], sizes = [16, 256], strides = [1, 1]} : vector<16x1024xf32> to vector<16x256xf32>
    %13 = vector.extract_strided_slice %8 {offsets = [0, 768], sizes = [16, 256], strides = [1, 1]} : vector<16x1024xf32> to vector<16x256xf32>
    %14 = arith.maximumf %12, %13 : vector<16x256xf32>
    %15 = arith.maximumf %11, %14 : vector<16x256xf32>
    %c0_7 = arith.constant 0 : index
    %c0_8 = arith.constant 0 : index
    %c0_9 = arith.constant 0 : index
    %16 = vector.load %arg4[%c0_7, %c0_8, %c0_9] : memref<1x16x256xf32, #tpu.memory_space<vmem>>, vector<1x16x256xf32>
    %17 = vector.shape_cast %16 : vector<1x16x256xf32> to vector<16x256xf32>
    %18 = vector.shape_cast %15 : vector<16x256xf32> to vector<1x16x256xf32>
    tpu.vector_store %arg4[%c0_7, %c0_8, %c0_9], %18 {strides = array<i32>} : memref<1x16x256xf32, #tpu.memory_space<vmem>>, vector<1x16x256xf32>,
    return
  }
  func.func @transform_0(%arg0: i32) -> (i32, i32, i32) {
    %c0_i32 = arith.constant 0 : i32
    %c0_i32_0 = arith.constant 0 : i32
    %c0_i32_1 = arith.constant 0 : i32
    return %arg0, %c0_i32, %c0_i32_0 : i32, i32, i32
  }
  func.func @transform_1(%arg0: i32) -> (i32, i32) {
    %c0_i32 = arith.constant 0 : i32
    %c0_i32_0 = arith.constant 0 : i32
    %c0_i32_1 = arith.constant 0 : i32
    return %c0_i32, %c0_i32_0 : i32, i32
  }
  func.func @transform_2(%arg0: i32) -> (i32, i32) {
    %c0_i32 = arith.constant 0 : i32
    %c0_i32_0 = arith.constant 0 : i32
    %c0_i32_1 = arith.constant 0 : i32
    return %c0_i32, %c0_i32_0 : i32, i32
  }
  func.func @transform_3(%arg0: i32) -> (i32, i32, i32) {
    %c0_i32 = arith.constant 0 : i32
    %c0_i32_0 = arith.constant 0 : i32
    %c0_i32_1 = arith.constant 0 : i32
    return %arg0, %c0_i32, %c0_i32_0 : i32, i32, i32
  }
}

module attributes {stable_mosaic.version = 11 : i64} {
  func.func @_fc_stack_kernel(%arg0: i32, %arg1: memref<2x400xbf16, #tpu.memory_space<vmem>>, %arg2: memref<400x128xbf16, #tpu.memory_space<vmem>>, %arg3: memref<1x128xf32, #tpu.memory_space<vmem>>, %arg4: memref<128x128xbf16, #tpu.memory_space<vmem>>, %arg5: memref<1x128xf32, #tpu.memory_space<vmem>>, %arg6: memref<128x128xbf16, #tpu.memory_space<vmem>>, %arg7: memref<1x128xf32, #tpu.memory_space<vmem>>, %arg8: memref<2x128xf32, #tpu.memory_space<vmem>>) attributes {dimension_semantics = [#tpu.dimension_semantics<parallel>], iteration_bounds = array<i64: 1>, scalar_prefetch = 0 : i64, scratch_operands = 0 : i64, tpu.core_type = #tpu.core_type<tc>, window_params = [{transform_indices = @transform_0, window_bounds = array<i64: 2, 400>}, {pipeline_mode = #tpu.pipeline_mode<synchronous>, transform_indices = @transform_1, window_bounds = array<i64: 400, 128>}, {pipeline_mode = #tpu.pipeline_mode<synchronous>, transform_indices = @transform_2, window_bounds = array<i64: 1, 128>}, {pipeline_mode = #tpu.pipeline_mode<synchronous>, transform_indices = @transform_3, window_bounds = array<i64: 128, 128>}, {pipeline_mode = #tpu.pipeline_mode<synchronous>, transform_indices = @transform_4, window_bounds = array<i64: 1, 128>}, {pipeline_mode = #tpu.pipeline_mode<synchronous>, transform_indices = @transform_5, window_bounds = array<i64: 128, 128>}, {pipeline_mode = #tpu.pipeline_mode<synchronous>, transform_indices = @transform_6, window_bounds = array<i64: 1, 128>}, {transform_indices = @transform_7, window_bounds = array<i64: 2, 128>}]} {
    %c0 = arith.constant 0 : index
    %c0_0 = arith.constant 0 : index
    %0 = vector.load %arg1[%c0, %c0_0] : memref<2x400xbf16, #tpu.memory_space<vmem>>, vector<2x400xbf16>
    %c0_1 = arith.constant 0 : index
    %c0_2 = arith.constant 0 : index
    %1 = vector.load %arg2[%c0_1, %c0_2] : memref<400x128xbf16, #tpu.memory_space<vmem>>, vector<400x128xbf16>
    %cst = arith.constant dense<0.000000e+00> : vector<2x128xf32>
    %2 = tpu.matmul %0, %1, %cst {dimension_numbers = #tpu.dot_dimension_numbers<[1], [0], [0], [1], [0, 0, 1, 1], [], []>} : vector<2x400xbf16>, vector<400x128xbf16>, vector<2x128xf32> -> vector<2x128xf32>
    %c0_3 = arith.constant 0 : index
    %c0_4 = arith.constant 0 : index
    %3 = vector.load %arg3[%c0_3, %c0_4] : memref<1x128xf32, #tpu.memory_space<vmem>>, vector<1x128xf32>
    %4 = vector.broadcast %3 : vector<1x128xf32> to vector<2x128xf32>
    %5 = arith.addf %2, %4 : vector<2x128xf32>
    %cst_5 = arith.constant 0.000000e+00 : f32
    %6 = vector.broadcast %cst_5 : f32 to vector<2x128xf32>
    %7 = arith.maximumf %5, %6 : vector<2x128xf32>
    %8 = arith.truncf %7 : vector<2x128xf32> to vector<2x128xbf16>
    %c0_6 = arith.constant 0 : index
    %c0_7 = arith.constant 0 : index
    %9 = vector.load %arg4[%c0_6, %c0_7] : memref<128x128xbf16, #tpu.memory_space<vmem>>, vector<128x128xbf16>
    %cst_8 = arith.constant dense<0.000000e+00> : vector<2x128xf32>
    %10 = tpu.matmul %8, %9, %cst_8 {dimension_numbers = #tpu.dot_dimension_numbers<[1], [0], [0], [1], [0, 0, 1, 1], [], []>} : vector<2x128xbf16>, vector<128x128xbf16>, vector<2x128xf32> -> vector<2x128xf32>
    %c0_9 = arith.constant 0 : index
    %c0_10 = arith.constant 0 : index
    %11 = vector.load %arg5[%c0_9, %c0_10] : memref<1x128xf32, #tpu.memory_space<vmem>>, vector<1x128xf32>
    %12 = vector.broadcast %11 : vector<1x128xf32> to vector<2x128xf32>
    %13 = arith.addf %10, %12 : vector<2x128xf32>
    %cst_11 = arith.constant 0.000000e+00 : f32
    %14 = vector.broadcast %cst_11 : f32 to vector<2x128xf32>
    %15 = arith.maximumf %13, %14 : vector<2x128xf32>
    %16 = arith.truncf %15 : vector<2x128xf32> to vector<2x128xbf16>
    %c0_12 = arith.constant 0 : index
    %c0_13 = arith.constant 0 : index
    %17 = vector.load %arg6[%c0_12, %c0_13] : memref<128x128xbf16, #tpu.memory_space<vmem>>, vector<128x128xbf16>
    %cst_14 = arith.constant dense<0.000000e+00> : vector<2x128xf32>
    %18 = tpu.matmul %16, %17, %cst_14 {dimension_numbers = #tpu.dot_dimension_numbers<[1], [0], [0], [1], [0, 0, 1, 1], [], []>} : vector<2x128xbf16>, vector<128x128xbf16>, vector<2x128xf32> -> vector<2x128xf32>
    %c0_15 = arith.constant 0 : index
    %c0_16 = arith.constant 0 : index
    %19 = vector.load %arg7[%c0_15, %c0_16] : memref<1x128xf32, #tpu.memory_space<vmem>>, vector<1x128xf32>
    %20 = vector.broadcast %19 : vector<1x128xf32> to vector<2x128xf32>
    %21 = arith.addf %18, %20 : vector<2x128xf32>
    %c0_17 = arith.constant 0 : index
    %c0_18 = arith.constant 0 : index
    %22 = vector.load %arg8[%c0_17, %c0_18] : memref<2x128xf32, #tpu.memory_space<vmem>>, vector<2x128xf32>
    tpu.vector_store %arg8[%c0_17, %c0_18], %21 {strides = array<i32>} : memref<2x128xf32, #tpu.memory_space<vmem>>, vector<2x128xf32>,
    return
  }
  func.func @transform_0(%arg0: i32) -> (i32, i32) {
    %c0_i32 = arith.constant 0 : i32
    %c0_i32_0 = arith.constant 0 : i32
    return %arg0, %c0_i32 : i32, i32
  }
  func.func @transform_1(%arg0: i32) -> (i32, i32) {
    %c0_i32 = arith.constant 0 : i32
    %c0_i32_0 = arith.constant 0 : i32
    %c0_i32_1 = arith.constant 0 : i32
    return %c0_i32, %c0_i32_0 : i32, i32
  }
  func.func @transform_2(%arg0: i32) -> (i32, i32) {
    %c0_i32 = arith.constant 0 : i32
    %c0_i32_0 = arith.constant 0 : i32
    %c0_i32_1 = arith.constant 0 : i32
    return %c0_i32, %c0_i32_0 : i32, i32
  }
  func.func @transform_3(%arg0: i32) -> (i32, i32) {
    %c0_i32 = arith.constant 0 : i32
    %c0_i32_0 = arith.constant 0 : i32
    %c0_i32_1 = arith.constant 0 : i32
    return %c0_i32, %c0_i32_0 : i32, i32
  }
  func.func @transform_4(%arg0: i32) -> (i32, i32) {
    %c0_i32 = arith.constant 0 : i32
    %c0_i32_0 = arith.constant 0 : i32
    %c0_i32_1 = arith.constant 0 : i32
    return %c0_i32, %c0_i32_0 : i32, i32
  }
  func.func @transform_5(%arg0: i32) -> (i32, i32) {
    %c0_i32 = arith.constant 0 : i32
    %c0_i32_0 = arith.constant 0 : i32
    %c0_i32_1 = arith.constant 0 : i32
    return %c0_i32, %c0_i32_0 : i32, i32
  }
  func.func @transform_6(%arg0: i32) -> (i32, i32) {
    %c0_i32 = arith.constant 0 : i32
    %c0_i32_0 = arith.constant 0 : i32
    %c0_i32_1 = arith.constant 0 : i32
    return %c0_i32, %c0_i32_0 : i32, i32
  }
  func.func @transform_7(%arg0: i32) -> (i32, i32) {
    %c0_i32 = arith.constant 0 : i32
    %c0_i32_0 = arith.constant 0 : i32
    return %arg0, %c0_i32 : i32, i32
  }
}

</mosaic_0001>

<llo_original>
// kernel: simple_cnn_forward.3
$region0: #{simple_cnn_forward.3}
  #allocation0 [shape = 'u32[]', space=smem, size = 0x4, offset = 0x4, fixed_abs, tag = 'smem constant byte address 0x4 - core index']
  #allocation1 [shape = 'u32[144,128]{1,0:T(1,128)}', space=vmem, size = 0x12000, scoped, tag = 'internal scratch']
  %s0 = inlined_call_operand.vmem [shape: bf16[1,75,2048], index: 0, kind: input, shape index: {}]
  %s1 = inlined_call_operand.vmem [shape: bf16[6,75], index: 1, kind: input, shape index: {}]
  %s2 = inlined_call_operand.vmem [shape: f32[6,1], index: 2, kind: input, shape index: {}]
  %s3 = inlined_call_operand.vmem [shape: f32[1,6,512], index: 3, kind: output, shape index: {}]
  %s4 = sld [smem:[#allocation0]]
  $region22: #{simple_cnn_forward.3} parent=0
    _
  %s6 = ssub.s32 1, %s4
  %s7 = scalar_select 0, %s6, %s4
  // Predicated region
  $region2: #{simple_cnn_forward.3} parent=0 // pred_check
    _
  $region3: #{simple_cnn_forward.3} parent=0 // pred_check_branch
    %9 = sbr.rel (0) target = $region5
  $region4: #{simple_cnn_forward.3} parent=0 // pred_region
    _
  $region5: #{simple_cnn_forward.3} parent=0 // pred_fallthru
    _
  // Predicated region
  $region6: #{simple_cnn_forward.3} parent=0 // pred_check
    _
  $region7: #{simple_cnn_forward.3} parent=0 // pred_check_branch
    %11 = sbr.rel (0) target = $region9
  $region8: #{simple_cnn_forward.3} parent=0 // pred_region
    _
  $region9: #{simple_cnn_forward.3} parent=0 // pred_fallthru
    _
  // Predicated region
  $region10: #{simple_cnn_forward.3} parent=0 // pred_check
    _
  $region11: #{simple_cnn_forward.3} parent=0 // pred_check_branch
    %13 = sbr.rel (0) target = $region13
  $region12: #{simple_cnn_forward.3} parent=0 // pred_region
    _
  $region13: #{simple_cnn_forward.3} parent=0 // pred_fallthru
    _
  %v15 = vld [vmem:[%s1] sm:$0x7]
  %v16 = vld [vmem:[%s0] sm:$0xff]
  %v17 = vld [vmem:[%s0 + $0x8] sm:$0xff]
  %v18 = vld [vmem:[%s0 + $0x10] sm:$0xff]
  %v19 = vld [vmem:[%s0 + $0x18] sm:$0xff]
  %v20 = vld [vmem:[%s0 + $0x20] sm:$0xff]
  %v21 = vld [vmem:[%s0 + $0x28] sm:$0xff]
  %v22 = vld [vmem:[%s0 + $0x30] sm:$0xff]
  %v23 = vld [vmem:[%s0 + $0x38] sm:$0xff]
  %v24 = vld [vmem:[%s0 + $0x40] sm:$0xff]
  %v25 = vld [vmem:[%s0 + $0x48] sm:$0xff]
  %v26 = vld [vmem:[%s0 + $0x50] sm:$0xff]
  %v27 = vld [vmem:[%s0 + $0x58] sm:$0xff]
  %v28 = vld [vmem:[%s0 + $0x60] sm:$0xff]
  %v29 = vld [vmem:[%s0 + $0x68] sm:$0xff]
  %v30 = vld [vmem:[%s0 + $0x70] sm:$0xff]
  %v31 = vld [vmem:[%s0 + $0x78] sm:$0xff]
  %v32 = vld [vmem:[%s0 + $0x80] sm:$0xff]
  %v33 = vld [vmem:[%s0 + $0x88] sm:$0xff]
  %v34 = vld [vmem:[%s0 + $0x90] sm:$0xff]
  %v35 = vld [vmem:[%s0 + $0x98] sm:$0xff]
  %v36 = vld [vmem:[%s0 + $0xa0] sm:$0xff]
  %v37 = vld [vmem:[%s0 + $0xa8] sm:$0xff]
  %v38 = vld [vmem:[%s0 + $0xb0] sm:$0xff]
  %v39 = vld [vmem:[%s0 + $0xb8] sm:$0xff]
  %v40 = vld [vmem:[%s0 + $0xc0] sm:$0xff]
  %v41 = vld [vmem:[%s0 + $0xc8] sm:$0xff]
  %v42 = vld [vmem:[%s0 + $0xd0] sm:$0xff]
  %v43 = vld [vmem:[%s0 + $0xd8] sm:$0xff]
  %v44 = vld [vmem:[%s0 + $0xe0] sm:$0xff]
  %v45 = vld [vmem:[%s0 + $0xe8] sm:$0xff]
  %v46 = vld [vmem:[%s0 + $0xf0] sm:$0xff]
  %v47 = vld [vmem:[%s0 + $0xf8] sm:$0xff]
  %v48 = vld [vmem:[%s0 + $0x100] sm:$0xff]
  %v49 = vld [vmem:[%s0 + $0x108] sm:$0xff]
  %v50 = vld [vmem:[%s0 + $0x110] sm:$0xff]
  %v51 = vld [vmem:[%s0 + $0x118] sm:$0xff]
  %v52 = vld [vmem:[%s0 + $0x120] sm:$0xff]
  %v53 = vld [vmem:[%s0 + $0x128] sm:$0xff]
  %v54 = vld [vmem:[%s0 + $0x130] sm:$0xff]
  %v55 = vld [vmem:[%s0 + $0x138] sm:$0xff]
  %v56 = vld [vmem:[%s0 + $0x140] sm:$0xff]
  %v57 = vld [vmem:[%s0 + $0x148] sm:$0xff]
  %v58 = vld [vmem:[%s0 + $0x150] sm:$0xff]
  %v59 = vld [vmem:[%s0 + $0x158] sm:$0xff]
  %v60 = vld [vmem:[%s0 + $0x160] sm:$0xff]
  %v61 = vld [vmem:[%s0 + $0x168] sm:$0xff]
  %v62 = vld [vmem:[%s0 + $0x170] sm:$0xff]
  %v63 = vld [vmem:[%s0 + $0x178] sm:$0xff]
  %v64 = vld [vmem:[%s0 + $0x180] sm:$0xff]
  %v65 = vld [vmem:[%s0 + $0x188] sm:$0xff]
  %v66 = vld [vmem:[%s0 + $0x190] sm:$0xff]
  %v67 = vld [vmem:[%s0 + $0x198] sm:$0xff]
  %v68 = vld [vmem:[%s0 + $0x1a0] sm:$0xff]
  %v69 = vld [vmem:[%s0 + $0x1a8] sm:$0xff]
  %v70 = vld [vmem:[%s0 + $0x1b0] sm:$0xff]
  %v71 = vld [vmem:[%s0 + $0x1b8] sm:$0xff]
  %v72 = vld [vmem:[%s0 + $0x1c0] sm:$0xff]
  %v73 = vld [vmem:[%s0 + $0x1c8] sm:$0xff]
  %v74 = vld [vmem:[%s0 + $0x1d0] sm:$0xff]
  %v75 = vld [vmem:[%s0 + $0x1d8] sm:$0xff]
  %v76 = vld [vmem:[%s0 + $0x1e0] sm:$0xff]
  %v77 = vld [vmem:[%s0 + $0x1e8] sm:$0xff]
  %v78 = vld [vmem:[%s0 + $0x1f0] sm:$0xff]
  %v79 = vld [vmem:[%s0 + $0x1f8] sm:$0xff]
  %v80 = vld [vmem:[%s0 + $0x200] sm:$0xff]
  %v81 = vld [vmem:[%s0 + $0x208] sm:$0xff]
  %v82 = vld [vmem:[%s0 + $0x210] sm:$0xff]
  %v83 = vld [vmem:[%s0 + $0x218] sm:$0xff]
  %v84 = vld [vmem:[%s0 + $0x220] sm:$0xff]
  %v85 = vld [vmem:[%s0 + $0x228] sm:$0xff]
  %v86 = vld [vmem:[%s0 + $0x230] sm:$0xff]
  %v87 = vld [vmem:[%s0 + $0x238] sm:$0xff]
  %v88 = vld [vmem:[%s0 + $0x240] sm:$0x33]
  %v89 = vld [vmem:[%s0 + $0x248] sm:$0x33]
  %v90 = vld [vmem:[%s0 + $0x250] sm:$0x33]
  %v91 = vld [vmem:[%s0 + $0x258] sm:$0x33]
  %v92 = vld [vmem:[%s0 + $0x260] sm:$0x33]
  %v93 = vld [vmem:[%s0 + $0x268] sm:$0x33]
  %v94 = vld [vmem:[%s0 + $0x270] sm:$0x33]
  %v95 = vld [vmem:[%s0 + $0x278] sm:$0x33]
  %v96 = vld [vmem:[%s2] sm:$0x3f]
  %98 = vset.pattern.permute.xlu0 0
  %99 = vperm.xlu0 %98, %v96
  %v100 = vpop.permute.xlu0 %99
  %v182 = vunpack.c.l.b16 %v16
  %v183 = vunpack.c.h.b16 %v16
  %v184 = vunpack.c.l.b16 %v17
  %v185 = vunpack.c.h.b16 %v17
  %v186 = vunpack.c.l.b16 %v18
  %v187 = vunpack.c.h.b16 %v18
  %v188 = vunpack.c.l.b16 %v19
  %v189 = vunpack.c.h.b16 %v19
  %v190 = vunpack.c.l.b16 %v20
  %v191 = vunpack.c.h.b16 %v20
  %v192 = vunpack.c.l.b16 %v21
  %v193 = vunpack.c.h.b16 %v21
  %v194 = vunpack.c.l.b16 %v22
  %v195 = vunpack.c.h.b16 %v22
  %v196 = vunpack.c.l.b16 %v23
  %v197 = vunpack.c.h.b16 %v23
  %v198 = vunpack.c.l.b16 %v24
  %v199 = vunpack.c.h.b16 %v24
  %v200 = vunpack.c.l.b16 %v25
  %v201 = vunpack.c.h.b16 %v25
  %v202 = vunpack.c.l.b16 %v26
  %v203 = vunpack.c.h.b16 %v26
  %v204 = vunpack.c.l.b16 %v27
  %v205 = vunpack.c.h.b16 %v27
  %v206 = vunpack.c.l.b16 %v28
  %v207 = vunpack.c.h.b16 %v28
  %v208 = vunpack.c.l.b16 %v29
  %v209 = vunpack.c.h.b16 %v29
  %v210 = vunpack.c.l.b16 %v30
  %v211 = vunpack.c.h.b16 %v30
  %v212 = vunpack.c.l.b16 %v31
  %v213 = vunpack.c.h.b16 %v31
  %v214 = vunpack.c.l.b16 %v32
  %v215 = vunpack.c.h.b16 %v32
  %v216 = vunpack.c.l.b16 %v33
  %v217 = vunpack.c.h.b16 %v33
  %v218 = vunpack.c.l.b16 %v34
  %v219 = vunpack.c.h.b16 %v34
  %v220 = vunpack.c.l.b16 %v35
  %v221 = vunpack.c.h.b16 %v35
  %v222 = vunpack.c.l.b16 %v36
  %v223 = vunpack.c.h.b16 %v36
  %v224 = vunpack.c.l.b16 %v37
  %v225 = vunpack.c.h.b16 %v37
  %v226 = vunpack.c.l.b16 %v38
  %v227 = vunpack.c.h.b16 %v38
  %v228 = vunpack.c.l.b16 %v39
  %v229 = vunpack.c.h.b16 %v39
  %v230 = vunpack.c.l.b16 %v40
  %v231 = vunpack.c.h.b16 %v40
  %v232 = vunpack.c.l.b16 %v41
  %v233 = vunpack.c.h.b16 %v41
  %v234 = vunpack.c.l.b16 %v42
  %v235 = vunpack.c.h.b16 %v42
  %v236 = vunpack.c.l.b16 %v43
  %v237 = vunpack.c.h.b16 %v43
  %v238 = vunpack.c.l.b16 %v44
  %v239 = vunpack.c.h.b16 %v44
  %v240 = vunpack.c.l.b16 %v45
  %v241 = vunpack.c.h.b16 %v45
  %v242 = vunpack.c.l.b16 %v46
  %v243 = vunpack.c.h.b16 %v46
  %v244 = vunpack.c.l.b16 %v47
  %v245 = vunpack.c.h.b16 %v47
  %v246 = vunpack.c.l.b16 %v48
  %v247 = vunpack.c.h.b16 %v48
  %v248 = vunpack.c.l.b16 %v49
  %v249 = vunpack.c.h.b16 %v49
  %v250 = vunpack.c.l.b16 %v50
  %v251 = vunpack.c.h.b16 %v50
  %v252 = vunpack.c.l.b16 %v51
  %v253 = vunpack.c.h.b16 %v51
  %v254 = vunpack.c.l.b16 %v52
  %v255 = vunpack.c.h.b16 %v52
  %v256 = vunpack.c.l.b16 %v53
  %v257 = vunpack.c.h.b16 %v53
  %v258 = vunpack.c.l.b16 %v54
  %v259 = vunpack.c.h.b16 %v54
  %v260 = vunpack.c.l.b16 %v55
  %v261 = vunpack.c.h.b16 %v55
  %v262 = vunpack.c.l.b16 %v56
  %v263 = vunpack.c.h.b16 %v56
  %v264 = vunpack.c.l.b16 %v57
  %v265 = vunpack.c.h.b16 %v57
  %v266 = vunpack.c.l.b16 %v58
  %v267 = vunpack.c.h.b16 %v58
  %v268 = vunpack.c.l.b16 %v59
  %v269 = vunpack.c.h.b16 %v59
  %v270 = vunpack.c.l.b16 %v60
  %v271 = vunpack.c.h.b16 %v60
  %v272 = vunpack.c.l.b16 %v61
  %v273 = vunpack.c.h.b16 %v61
  %v274 = vunpack.c.l.b16 %v62
  %v275 = vunpack.c.h.b16 %v62
  %v276 = vunpack.c.l.b16 %v63
  %v277 = vunpack.c.h.b16 %v63
  %v278 = vunpack.c.l.b16 %v64
  %v279 = vunpack.c.h.b16 %v64
  %v280 = vunpack.c.l.b16 %v65
  %v281 = vunpack.c.h.b16 %v65
  %v282 = vunpack.c.l.b16 %v66
  %v283 = vunpack.c.h.b16 %v66
  %v284 = vunpack.c.l.b16 %v67
  %v285 = vunpack.c.h.b16 %v67
  %v286 = vunpack.c.l.b16 %v68
  %v287 = vunpack.c.h.b16 %v68
  %v288 = vunpack.c.l.b16 %v69
  %v289 = vunpack.c.h.b16 %v69
  %v290 = vunpack.c.l.b16 %v70
  %v291 = vunpack.c.h.b16 %v70
  %v292 = vunpack.c.l.b16 %v71
  %v293 = vunpack.c.h.b16 %v71
  %v294 = vunpack.c.l.b16 %v72
  %v295 = vunpack.c.h.b16 %v72
  %v296 = vunpack.c.l.b16 %v73
  %v297 = vunpack.c.h.b16 %v73
  %v298 = vunpack.c.l.b16 %v74
  %v299 = vunpack.c.h.b16 %v74
  %v300 = vunpack.c.l.b16 %v75
  %v301 = vunpack.c.h.b16 %v75
  %v302 = vunpack.c.l.b16 %v76
  %v303 = vunpack.c.h.b16 %v76
  %v304 = vunpack.c.l.b16 %v77
  %v305 = vunpack.c.h.b16 %v77
  %v306 = vunpack.c.l.b16 %v78
  %v307 = vunpack.c.h.b16 %v78
  %v308 = vunpack.c.l.b16 %v79
  %v309 = vunpack.c.h.b16 %v79
  %v310 = vunpack.c.l.b16 %v80
  %v311 = vunpack.c.h.b16 %v80
  %v312 = vunpack.c.l.b16 %v81
  %v313 = vunpack.c.h.b16 %v81
  %v314 = vunpack.c.l.b16 %v82
  %v315 = vunpack.c.h.b16 %v82
  %v316 = vunpack.c.l.b16 %v83
  %v317 = vunpack.c.h.b16 %v83
  %v318 = vunpack.c.l.b16 %v84
  %v319 = vunpack.c.h.b16 %v84
  %v320 = vunpack.c.l.b16 %v85
  %v321 = vunpack.c.h.b16 %v85
  %v322 = vunpack.c.l.b16 %v86
  %v323 = vunpack.c.h.b16 %v86
  %v324 = vunpack.c.l.b16 %v87
  %v325 = vunpack.c.h.b16 %v87
  %v326 = vunpack.c.l.b16 %v88
  %v327 = vunpack.c.h.b16 %v88
  %v328 = vunpack.c.l.b16 %v89
  %v329 = vunpack.c.h.b16 %v89
  %v330 = vunpack.c.l.b16 %v90
  %v331 = vunpack.c.h.b16 %v90
  %v332 = vunpack.c.l.b16 %v91
  %v333 = vunpack.c.h.b16 %v91
  %v334 = vunpack.c.l.b16 %v92
  %v335 = vunpack.c.h.b16 %v92
  %v336 = vunpack.c.l.b16 %v93
  %v337 = vunpack.c.h.b16 %v93
  %v338 = vunpack.c.l.b16 %v94
  %v339 = vunpack.c.h.b16 %v94
  %v340 = vunpack.c.l.b16 %v95
  %v341 = vunpack.c.h.b16 %v95
  %v342 = vpack.c.b16 %v198, %v182
  %v343 = vpack.c.b16 %v199, %v183
  %v344 = vpack.c.b16 %v200, %v184
  %v345 = vpack.c.b16 %v201, %v185
  %v346 = vpack.c.b16 %v202, %v186
  %v347 = vpack.c.b16 %v203, %v187
  %v348 = vpack.c.b16 %v204, %v188
  %v349 = vpack.c.b16 %v205, %v189
  %v350 = vpack.c.b16 %v206, %v190
  %v351 = vpack.c.b16 %v207, %v191
  %v352 = vpack.c.b16 %v208, %v192
  %v353 = vpack.c.b16 %v209, %v193
  %v354 = vpack.c.b16 %v210, %v194
  %v355 = vpack.c.b16 %v211, %v195
  %v356 = vpack.c.b16 %v212, %v196
  %v357 = vpack.c.b16 %v213, %v197
  %v358 = vpack.c.b16 %v230, %v214
  %v359 = vpack.c.b16 %v231, %v215
  %v360 = vpack.c.b16 %v232, %v216
  %v361 = vpack.c.b16 %v233, %v217
  %v362 = vpack.c.b16 %v234, %v218
  %v363 = vpack.c.b16 %v235, %v219
  %v364 = vpack.c.b16 %v236, %v220
  %v365 = vpack.c.b16 %v237, %v221
  %v366 = vpack.c.b16 %v238, %v222
  %v367 = vpack.c.b16 %v239, %v223
  %v368 = vpack.c.b16 %v240, %v224
  %v369 = vpack.c.b16 %v241, %v225
  %v370 = vpack.c.b16 %v242, %v226
  %v371 = vpack.c.b16 %v243, %v227
  %v372 = vpack.c.b16 %v244, %v228
  %v373 = vpack.c.b16 %v245, %v229
  %v374 = vpack.c.b16 %v262, %v246
  %v375 = vpack.c.b16 %v263, %v247
  %v376 = vpack.c.b16 %v264, %v248
  %v377 = vpack.c.b16 %v265, %v249
  %v378 = vpack.c.b16 %v266, %v250
  %v379 = vpack.c.b16 %v267, %v251
  %v380 = vpack.c.b16 %v268, %v252
  %v381 = vpack.c.b16 %v269, %v253
  %v382 = vpack.c.b16 %v270, %v254
  %v383 = vpack.c.b16 %v271, %v255
  %v384 = vpack.c.b16 %v272, %v256
  %v385 = vpack.c.b16 %v273, %v257
  %v386 = vpack.c.b16 %v274, %v258
  %v387 = vpack.c.b16 %v275, %v259
  %v388 = vpack.c.b16 %v276, %v260
  %v389 = vpack.c.b16 %v277, %v261
  %v390 = vpack.c.b16 %v294, %v278
  %v391 = vpack.c.b16 %v295, %v279
  %v392 = vpack.c.b16 %v296, %v280
  %v393 = vpack.c.b16 %v297, %v281
  %v394 = vpack.c.b16 %v298, %v282
  %v395 = vpack.c.b16 %v299, %v283
  %v396 = vpack.c.b16 %v300, %v284
  %v397 = vpack.c.b16 %v301, %v285
  %v398 = vpack.c.b16 %v302, %v286
  %v399 = vpack.c.b16 %v303, %v287
  %v400 = vpack.c.b16 %v304, %v288
  %v401 = vpack.c.b16 %v305, %v289
  %v402 = vpack.c.b16 %v306, %v290
  %v403 = vpack.c.b16 %v307, %v291
  %v404 = vpack.c.b16 %v308, %v292
  %v405 = vpack.c.b16 %v309, %v293
  %v406 = vpack.c.b16 %v326, %v310
  %v407 = vpack.c.b16 %v327, %v311
  %v408 = vpack.c.b16 %v328, %v312
  %v409 = vpack.c.b16 %v329, %v313
  %v410 = vpack.c.b16 %v330, %v314
  %v411 = vpack.c.b16 %v331, %v315
  %v412 = vpack.c.b16 %v332, %v316
  %v413 = vpack.c.b16 %v333, %v317
  %v414 = vpack.c.b16 %v334, %v318
  %v415 = vpack.c.b16 %v335, %v319
  %v416 = vpack.c.b16 %v336, %v320
  %v417 = vpack.c.b16 %v337, %v321
  %v418 = vpack.c.b16 %v338, %v322
  %v419 = vpack.c.b16 %v339, %v323
  %v420 = vpack.c.b16 %v340, %v324
  %v421 = vpack.c.b16 %v341, %v325
  %vm486 = vcmask 613376
  %v488 = vsel %vm486, %v15, 0
  %vm490 = vcmask 1044480
  %vm491 = vcmask 1045504
  %v492 = vsel %vm490, 4294967295, 65535
  %v493 = vsel %vm491, %v492, 0
  %v495 = vand.u32 %v406, %v493
  %v498 = vand.u32 %v407, %v493
  %v501 = vand.u32 %v408, %v493
  %v504 = vand.u32 %v409, %v493
  %v507 = vand.u32 %v410, %v493
  %v510 = vand.u32 %v411, %v493
  %v513 = vand.u32 %v412, %v493
  %v516 = vand.u32 %v413, %v493
  %v519 = vand.u32 %v414, %v493
  %v522 = vand.u32 %v415, %v493
  %v525 = vand.u32 %v416, %v493
  %v528 = vand.u32 %v417, %v493
  %v531 = vand.u32 %v418, %v493
  %v534 = vand.u32 %v419, %v493
  %v537 = vand.u32 %v420, %v493
  %v540 = vand.u32 %v421, %v493
  %542 = vmatprep.subr.bf16.mxu0 %v343
  %543 = vmatpush1.bf16.msra.mxu0 %v342
  %544 = vmatprep.subr.bf16.mxu0 %v359
  %545 = vmatpush1.bf16.msra.mxu0 %v358
  %546 = vmatprep.subr.bf16.mxu0 %v375
  %547 = vmatpush1.bf16.msra.mxu0 %v374
  %548 = vmatprep.subr.bf16.mxu0 %v391
  %549 = vmatpush1.bf16.msra.mxu0 %v390
  %550 = vmatprep.subr.bf16.mxu0 %v498
  %551 = vmatpush1.bf16.msra.mxu0 %v495
  %552 = vmatprep.subr.bf16.mxu0 0
  %553 = vmatpush1.bf16.msra.mxu0 0
  %554 = vmatprep.subr.bf16.mxu0 0
  %555 = vmatpush1.bf16.msra.mxu0 0
  %556 = vmatprep.subr.bf16.mxu0 0
  %557 = vmatpush1.bf16.msra.mxu0 0
  %558 = vmatprep.subr.bf16.mxu0 0
  %559 = vmatpush1.bf16.msra.mxu0 0
  %560 = vmatprep.subr.bf16.mxu0 0
  %561 = vmatpush1.bf16.msra.mxu0 0
  %562 = vmatprep.subr.bf16.mxu0 0
  %563 = vmatpush1.bf16.msra.mxu0 0
  %564 = vmatprep.subr.bf16.mxu0 0
  %565 = vmatpush1.bf16.msra.mxu0 0
  %566 = vmatprep.subr.bf16.mxu0 0
  %567 = vmatpush1.bf16.msra.mxu0 0
  %568 = vmatprep.subr.bf16.mxu0 0
  %569 = vmatpush1.bf16.msra.mxu0 0
  %570 = vmatprep.subr.bf16.mxu0 0
  %571 = vmatpush1.bf16.msra.mxu0 0
  %572 = vmatprep.subr.bf16.mxu0 0
  %573 = vmatpush1.bf16.msra.mxu0 0
  %574 = vmatprep.mubr.bf16.mxu0 0
  %575 = vmatmul.mubr.bf16.gmra.mrb[0].mxu0 %v488
  %v576 = vpop.f32.mrb[0].mxu0
  %v577 = vadd.f32 %v100, %v576
  %v578 = vpop.f32.mrb[0].mxu0
  %v579 = vadd.f32 %v100, %v578
  %v580 = vpop.f32.mrb[0].mxu0
  %v581 = vpop.f32.mrb[0].mxu0
  %582 = vdwg.mxu0
  %583 = vmatprep.subr.bf16.mxu0 %v345
  %584 = vmatpush1.bf16.msra.mxu0 %v344
  %585 = vmatprep.subr.bf16.mxu0 %v361
  %586 = vmatpush1.bf16.msra.mxu0 %v360
  %587 = vmatprep.subr.bf16.mxu0 %v377
  %588 = vmatpush1.bf16.msra.mxu0 %v376
  %589 = vmatprep.subr.bf16.mxu0 %v393
  %590 = vmatpush1.bf16.msra.mxu0 %v392
  %591 = vmatprep.subr.bf16.mxu0 %v504
  %592 = vmatpush1.bf16.msra.mxu0 %v501
  %593 = vmatprep.subr.bf16.mxu0 0
  %594 = vmatpush1.bf16.msra.mxu0 0
  %595 = vmatprep.subr.bf16.mxu0 0
  %596 = vmatpush1.bf16.msra.mxu0 0
  %597 = vmatprep.subr.bf16.mxu0 0
  %598 = vmatpush1.bf16.msra.mxu0 0
  %599 = vmatprep.subr.bf16.mxu0 0
  %600 = vmatpush1.bf16.msra.mxu0 0
  %601 = vmatprep.subr.bf16.mxu0 0
  %602 = vmatpush1.bf16.msra.mxu0 0
  %603 = vmatprep.subr.bf16.mxu0 0
  %604 = vmatpush1.bf16.msra.mxu0 0
  %605 = vmatprep.subr.bf16.mxu0 0
  %606 = vmatpush1.bf16.msra.mxu0 0
  %607 = vmatprep.subr.bf16.mxu0 0
  %608 = vmatpush1.bf16.msra.mxu0 0
  %609 = vmatprep.subr.bf16.mxu0 0
  %610 = vmatpush1.bf16.msra.mxu0 0
  %611 = vmatprep.subr.bf16.mxu0 0
  %612 = vmatpush1.bf16.msra.mxu0 0
  %613 = vmatprep.subr.bf16.mxu0 0
  %614 = vmatpush1.bf16.msra.mxu0 0
  %615 = vmatprep.mubr.bf16.mxu0 0
  %616 = vmatmul.mubr.bf16.gmra.mrb[0].mxu0 %v488
  %v617 = vpop.f32.mrb[0].mxu0
  %v618 = vadd.f32 %v100, %v617
  %v619 = vpop.f32.mrb[0].mxu0
  %v620 = vadd.f32 %v100, %v619
  %v621 = vpop.f32.mrb[0].mxu0
  %v622 = vpop.f32.mrb[0].mxu0
  %623 = vdwg.mxu0
  %624 = vmatprep.subr.bf16.mxu0 %v347
  %625 = vmatpush1.bf16.msra.mxu0 %v346
  %626 = vmatprep.subr.bf16.mxu0 %v363
  %627 = vmatpush1.bf16.msra.mxu0 %v362
  %628 = vmatprep.subr.bf16.mxu0 %v379
  %629 = vmatpush1.bf16.msra.mxu0 %v378
  %630 = vmatprep.subr.bf16.mxu0 %v395
  %631 = vmatpush1.bf16.msra.mxu0 %v394
  %632 = vmatprep.subr.bf16.mxu0 %v510
  %633 = vmatpush1.bf16.msra.mxu0 %v507
  %634 = vmatprep.subr.bf16.mxu0 0
  %635 = vmatpush1.bf16.msra.mxu0 0
  %636 = vmatprep.subr.bf16.mxu0 0
  %637 = vmatpush1.bf16.msra.mxu0 0
  %638 = vmatprep.subr.bf16.mxu0 0
  %639 = vmatpush1.bf16.msra.mxu0 0
  %640 = vmatprep.subr.bf16.mxu0 0
  %641 = vmatpush1.bf16.msra.mxu0 0
  %642 = vmatprep.subr.bf16.mxu0 0
  %643 = vmatpush1.bf16.msra.mxu0 0
  %644 = vmatprep.subr.bf16.mxu0 0
  %645 = vmatpush1.bf16.msra.mxu0 0
  %646 = vmatprep.subr.bf16.mxu0 0
  %647 = vmatpush1.bf16.msra.mxu0 0
  %648 = vmatprep.subr.bf16.mxu0 0
  %649 = vmatpush1.bf16.msra.mxu0 0
  %650 = vmatprep.subr.bf16.mxu0 0
  %651 = vmatpush1.bf16.msra.mxu0 0
  %652 = vmatprep.subr.bf16.mxu0 0
  %653 = vmatpush1.bf16.msra.mxu0 0
  %654 = vmatprep.subr.bf16.mxu0 0
  %655 = vmatpush1.bf16.msra.mxu0 0
  %656 = vmatprep.mubr.bf16.mxu0 0
  %657 = vmatmul.mubr.bf16.gmra.mrb[0].mxu0 %v488
  %v658 = vpop.f32.mrb[0].mxu0
  %v659 = vadd.f32 %v100, %v658
  %v660 = vpop.f32.mrb[0].mxu0
  %v661 = vadd.f32 %v100, %v660
  %v662 = vpop.f32.mrb[0].mxu0
  %v663 = vpop.f32.mrb[0].mxu0
  %664 = vdwg.mxu0
  %665 = vmatprep.subr.bf16.mxu0 %v349
  %666 = vmatpush1.bf16.msra.mxu0 %v348
  %667 = vmatprep.subr.bf16.mxu0 %v365
  %668 = vmatpush1.bf16.msra.mxu0 %v364
  %669 = vmatprep.subr.bf16.mxu0 %v381
  %670 = vmatpush1.bf16.msra.mxu0 %v380
  %671 = vmatprep.subr.bf16.mxu0 %v397
  %672 = vmatpush1.bf16.msra.mxu0 %v396
  %673 = vmatprep.subr.bf16.mxu0 %v516
  %674 = vmatpush1.bf16.msra.mxu0 %v513
  %675 = vmatprep.subr.bf16.mxu0 0
  %676 = vmatpush1.bf16.msra.mxu0 0
  %677 = vmatprep.subr.bf16.mxu0 0
  %678 = vmatpush1.bf16.msra.mxu0 0
  %679 = vmatprep.subr.bf16.mxu0 0
  %680 = vmatpush1.bf16.msra.mxu0 0
  %681 = vmatprep.subr.bf16.mxu0 0
  %682 = vmatpush1.bf16.msra.mxu0 0
  %683 = vmatprep.subr.bf16.mxu0 0
  %684 = vmatpush1.bf16.msra.mxu0 0
  %685 = vmatprep.subr.bf16.mxu0 0
  %686 = vmatpush1.bf16.msra.mxu0 0
  %687 = vmatprep.subr.bf16.mxu0 0
  %688 = vmatpush1.bf16.msra.mxu0 0
  %689 = vmatprep.subr.bf16.mxu0 0
  %690 = vmatpush1.bf16.msra.mxu0 0
  %691 = vmatprep.subr.bf16.mxu0 0
  %692 = vmatpush1.bf16.msra.mxu0 0
  %693 = vmatprep.subr.bf16.mxu0 0
  %694 = vmatpush1.bf16.msra.mxu0 0
  %695 = vmatprep.subr.bf16.mxu0 0
  %696 = vmatpush1.bf16.msra.mxu0 0
  %697 = vmatprep.mubr.bf16.mxu0 0
  %698 = vmatmul.mubr.bf16.gmra.mrb[0].mxu0 %v488
  %v699 = vpop.f32.mrb[0].mxu0
  %v700 = vadd.f32 %v100, %v699
  %v701 = vpop.f32.mrb[0].mxu0
  %v702 = vadd.f32 %v100, %v701
  %v703 = vpop.f32.mrb[0].mxu0
  %v704 = vpop.f32.mrb[0].mxu0
  %705 = vdwg.mxu0
  %706 = vmatprep.subr.bf16.mxu0 %v351
  %707 = vmatpush1.bf16.msra.mxu0 %v350
  %708 = vmatprep.subr.bf16.mxu0 %v367
  %709 = vmatpush1.bf16.msra.mxu0 %v366
  %710 = vmatprep.subr.bf16.mxu0 %v383
  %711 = vmatpush1.bf16.msra.mxu0 %v382
  %712 = vmatprep.subr.bf16.mxu0 %v399
  %713 = vmatpush1.bf16.msra.mxu0 %v398
  %714 = vmatprep.subr.bf16.mxu0 %v522
  %715 = vmatpush1.bf16.msra.mxu0 %v519
  %716 = vmatprep.subr.bf16.mxu0 0
  %717 = vmatpush1.bf16.msra.mxu0 0
  %718 = vmatprep.subr.bf16.mxu0 0
  %719 = vmatpush1.bf16.msra.mxu0 0
  %720 = vmatprep.subr.bf16.mxu0 0
  %721 = vmatpush1.bf16.msra.mxu0 0
  %722 = vmatprep.subr.bf16.mxu0 0
  %723 = vmatpush1.bf16.msra.mxu0 0
  %724 = vmatprep.subr.bf16.mxu0 0
  %725 = vmatpush1.bf16.msra.mxu0 0
  %726 = vmatprep.subr.bf16.mxu0 0
  %727 = vmatpush1.bf16.msra.mxu0 0
  %728 = vmatprep.subr.bf16.mxu0 0
  %729 = vmatpush1.bf16.msra.mxu0 0
  %730 = vmatprep.subr.bf16.mxu0 0
  %731 = vmatpush1.bf16.msra.mxu0 0
  %732 = vmatprep.subr.bf16.mxu0 0
  %733 = vmatpush1.bf16.msra.mxu0 0
  %734 = vmatprep.subr.bf16.mxu0 0
  %735 = vmatpush1.bf16.msra.mxu0 0
  %736 = vmatprep.subr.bf16.mxu0 0
  %737 = vmatpush1.bf16.msra.mxu0 0
  %738 = vmatprep.mubr.bf16.mxu0 0
  %739 = vmatmul.mubr.bf16.gmra.mrb[0].mxu0 %v488
  %v740 = vpop.f32.mrb[0].mxu0
  %v741 = vadd.f32 %v100, %v740
  %v742 = vpop.f32.mrb[0].mxu0
  %v743 = vadd.f32 %v100, %v742
  %v744 = vpop.f32.mrb[0].mxu0
  %v745 = vpop.f32.mrb[0].mxu0
  %746 = vdwg.mxu0
  %747 = vmatprep.subr.bf16.mxu0 %v353
  %748 = vmatpush1.bf16.msra.mxu0 %v352
  %749 = vmatprep.subr.bf16.mxu0 %v369
  %750 = vmatpush1.bf16.msra.mxu0 %v368
  %751 = vmatprep.subr.bf16.mxu0 %v385
  %752 = vmatpush1.bf16.msra.mxu0 %v384
  %753 = vmatprep.subr.bf16.mxu0 %v401
  %754 = vmatpush1.bf16.msra.mxu0 %v400
  %755 = vmatprep.subr.bf16.mxu0 %v528
  %756 = vmatpush1.bf16.msra.mxu0 %v525
  %757 = vmatprep.subr.bf16.mxu0 0
  %758 = vmatpush1.bf16.msra.mxu0 0
  %759 = vmatprep.subr.bf16.mxu0 0
  %760 = vmatpush1.bf16.msra.mxu0 0
  %761 = vmatprep.subr.bf16.mxu0 0
  %762 = vmatpush1.bf16.msra.mxu0 0
  %763 = vmatprep.subr.bf16.mxu0 0
  %764 = vmatpush1.bf16.msra.mxu0 0
  %765 = vmatprep.subr.bf16.mxu0 0
  %766 = vmatpush1.bf16.msra.mxu0 0
  %767 = vmatprep.subr.bf16.mxu0 0
  %768 = vmatpush1.bf16.msra.mxu0 0
  %769 = vmatprep.subr.bf16.mxu0 0
  %770 = vmatpush1.bf16.msra.mxu0 0
  %771 = vmatprep.subr.bf16.mxu0 0
  %772 = vmatpush1.bf16.msra.mxu0 0
  %773 = vmatprep.subr.bf16.mxu0 0
  %774 = vmatpush1.bf16.msra.mxu0 0
  %775 = vmatprep.subr.bf16.mxu0 0
  %776 = vmatpush1.bf16.msra.mxu0 0
  %777 = vmatprep.subr.bf16.mxu0 0
  %778 = vmatpush1.bf16.msra.mxu0 0
  %779 = vmatprep.mubr.bf16.mxu0 0
  %780 = vmatmul.mubr.bf16.gmra.mrb[0].mxu0 %v488
  %v781 = vpop.f32.mrb[0].mxu0
  %v782 = vadd.f32 %v100, %v781
  %v783 = vpop.f32.mrb[0].mxu0
  %v784 = vadd.f32 %v100, %v783
  %v785 = vpop.f32.mrb[0].mxu0
  %v786 = vpop.f32.mrb[0].mxu0
  %787 = vdwg.mxu0
  %788 = vmatprep.subr.bf16.mxu0 %v355
  %789 = vmatpush1.bf16.msra.mxu0 %v354
  %790 = vmatprep.subr.bf16.mxu0 %v371
  %791 = vmatpush1.bf16.msra.mxu0 %v370
  %792 = vmatprep.subr.bf16.mxu0 %v387
  %793 = vmatpush1.bf16.msra.mxu0 %v386
  %794 = vmatprep.subr.bf16.mxu0 %v403
  %795 = vmatpush1.bf16.msra.mxu0 %v402
  %796 = vmatprep.subr.bf16.mxu0 %v534
  %797 = vmatpush1.bf16.msra.mxu0 %v531
  %798 = vmatprep.subr.bf16.mxu0 0
  %799 = vmatpush1.bf16.msra.mxu0 0
  %800 = vmatprep.subr.bf16.mxu0 0
  %801 = vmatpush1.bf16.msra.mxu0 0
  %802 = vmatprep.subr.bf16.mxu0 0
  %803 = vmatpush1.bf16.msra.mxu0 0
  %804 = vmatprep.subr.bf16.mxu0 0
  %805 = vmatpush1.bf16.msra.mxu0 0
  %806 = vmatprep.subr.bf16.mxu0 0
  %807 = vmatpush1.bf16.msra.mxu0 0
  %808 = vmatprep.subr.bf16.mxu0 0
  %809 = vmatpush1.bf16.msra.mxu0 0
  %810 = vmatprep.subr.bf16.mxu0 0
  %811 = vmatpush1.bf16.msra.mxu0 0
  %812 = vmatprep.subr.bf16.mxu0 0
  %813 = vmatpush1.bf16.msra.mxu0 0
  %814 = vmatprep.subr.bf16.mxu0 0
  %815 = vmatpush1.bf16.msra.mxu0 0
  %816 = vmatprep.subr.bf16.mxu0 0
  %817 = vmatpush1.bf16.msra.mxu0 0
  %818 = vmatprep.subr.bf16.mxu0 0
  %819 = vmatpush1.bf16.msra.mxu0 0
  %820 = vmatprep.mubr.bf16.mxu0 0
  %821 = vmatmul.mubr.bf16.gmra.mrb[0].mxu0 %v488
  %v822 = vpop.f32.mrb[0].mxu0
  %v823 = vadd.f32 %v100, %v822
  %v824 = vpop.f32.mrb[0].mxu0
  %v825 = vadd.f32 %v100, %v824
  %v826 = vpop.f32.mrb[0].mxu0
  %v827 = vpop.f32.mrb[0].mxu0
  %828 = vdwg.mxu0
  %829 = vmatprep.subr.bf16.mxu0 %v357
  %830 = vmatpush1.bf16.msra.mxu0 %v356
  %831 = vmatprep.subr.bf16.mxu0 %v373
  %832 = vmatpush1.bf16.msra.mxu0 %v372
  %833 = vmatprep.subr.bf16.mxu0 %v389
  %834 = vmatpush1.bf16.msra.mxu0 %v388
  %835 = vmatprep.subr.bf16.mxu0 %v405
  %836 = vmatpush1.bf16.msra.mxu0 %v404
  %837 = vmatprep.subr.bf16.mxu0 %v540
  %838 = vmatpush1.bf16.msra.mxu0 %v537
  %839 = vmatprep.subr.bf16.mxu0 0
  %840 = vmatpush1.bf16.msra.mxu0 0
  %841 = vmatprep.subr.bf16.mxu0 0
  %842 = vmatpush1.bf16.msra.mxu0 0
  %843 = vmatprep.subr.bf16.mxu0 0
  %844 = vmatpush1.bf16.msra.mxu0 0
  %845 = vmatprep.subr.bf16.mxu0 0
  %846 = vmatpush1.bf16.msra.mxu0 0
  %847 = vmatprep.subr.bf16.mxu0 0
  %848 = vmatpush1.bf16.msra.mxu0 0
  %849 = vmatprep.subr.bf16.mxu0 0
  %850 = vmatpush1.bf16.msra.mxu0 0
  %851 = vmatprep.subr.bf16.mxu0 0
  %852 = vmatpush1.bf16.msra.mxu0 0
  %853 = vmatprep.subr.bf16.mxu0 0
  %854 = vmatpush1.bf16.msra.mxu0 0
  %855 = vmatprep.subr.bf16.mxu0 0
  %856 = vmatpush1.bf16.msra.mxu0 0
  %857 = vmatprep.subr.bf16.mxu0 0
  %858 = vmatpush1.bf16.msra.mxu0 0
  %859 = vmatprep.subr.bf16.mxu0 0
  %860 = vmatpush1.bf16.msra.mxu0 0
  %861 = vmatprep.mubr.bf16.mxu0 0
  %862 = vmatmul.mubr.bf16.gmra.mrb[0].mxu0 %v488
  %v863 = vpop.f32.mrb[0].mxu0
  %v864 = vadd.f32 %v100, %v863
  %v865 = vpop.f32.mrb[0].mxu0
  %v866 = vadd.f32 %v100, %v865
  %v867 = vpop.f32.mrb[0].mxu0
  %v868 = vpop.f32.mrb[0].mxu0
  %869 = vdwg.mxu0
  %v870 = vmax.f32 %v577, 0.0
  %v871 = vmax.f32 %v579, 0.0
  %v872 = vmax.f32 %v618, 0.0
  %v873 = vmax.f32 %v620, 0.0
  %v874 = vmax.f32 %v659, 0.0
  %v875 = vmax.f32 %v661, 0.0
  %v876 = vmax.f32 %v700, 0.0
  %v877 = vmax.f32 %v702, 0.0
  %v878 = vmax.f32 %v741, 0.0
  %v879 = vmax.f32 %v743, 0.0
  %v880 = vmax.f32 %v782, 0.0
  %v881 = vmax.f32 %v784, 0.0
  %v882 = vmax.f32 %v823, 0.0
  %v883 = vmax.f32 %v825, 0.0
  %v884 = vmax.f32 %v864, 0.0
  %v885 = vmax.f32 %v866, 0.0
  %v886 = vmax.f32 %v870, %v874
  %v887 = vmax.f32 %v871, %v875
  %v888 = vmax.f32 %v872, %v876
  %v889 = vmax.f32 %v873, %v877
  %v890 = vmax.f32 %v878, %v882
  %v891 = vmax.f32 %v879, %v883
  %v892 = vmax.f32 %v880, %v884
  %v893 = vmax.f32 %v881, %v885
  %v894 = vmax.f32 %v886, %v890
  %v895 = vmax.f32 %v887, %v891
  %v896 = vmax.f32 %v888, %v892
  %v897 = vmax.f32 %v889, %v893
  %898 = vst [vmem:[%s3] sm:$0x3f] %v894
  %899 = vst [vmem:[%s3 + $0x8] sm:$0x3f] %v895
  %900 = vst [vmem:[%s3 + $0x10] sm:$0x3f] %v896
  %901 = vst [vmem:[%s3 + $0x18] sm:$0x3f] %v897
  // Predicated region
  $region14: #{simple_cnn_forward.3} parent=0 // pred_check
    _
  $region15: #{simple_cnn_forward.3} parent=0 // pred_check_branch
    %903 = sbr.rel (0) target = $region17
  $region16: #{simple_cnn_forward.3} parent=0 // pred_region
    _
  $region17: #{simple_cnn_forward.3} parent=0 // pred_fallthru
    _
  // Predicated region
  $region18: #{simple_cnn_forward.3} parent=0 // pred_check
    _
  $region19: #{simple_cnn_forward.3} parent=0 // pred_check_branch
    %905 = sbr.rel (0) target = $region21
  $region20: #{simple_cnn_forward.3} parent=0 // pred_region
    _
  $region21: #{simple_cnn_forward.3} parent=0 // pred_fallthru
    _

// kernel: simple_cnn_forward.4
$region0: #{simple_cnn_forward.4}
  #allocation0 [shape = 'u32[]', space=smem, size = 0x4, offset = 0x4, fixed_abs, tag = 'smem constant byte address 0x4 - core index']
  #allocation1 [shape = 'u32[144,128]{1,0:T(1,128)}', space=vmem, size = 0x12000, scoped, tag = 'internal scratch']
  %s0 = inlined_call_operand.vmem [shape: bf16[1,150,1024], index: 0, kind: input, shape index: {}]
  %s1 = inlined_call_operand.vmem [shape: bf16[16,150], index: 1, kind: input, shape index: {}]
  %s2 = inlined_call_operand.vmem [shape: f32[16,1], index: 2, kind: input, shape index: {}]
  %s3 = inlined_call_operand.vmem [shape: f32[1,16,256], index: 3, kind: output, shape index: {}]
  %s4 = sld [smem:[#allocation0]]
  $region22: #{simple_cnn_forward.4} parent=0
    _
  %s6 = ssub.s32 1, %s4
  %s7 = scalar_select 0, %s6, %s4
  // Predicated region
  $region2: #{simple_cnn_forward.4} parent=0 // pred_check
    _
  $region3: #{simple_cnn_forward.4} parent=0 // pred_check_branch
    %9 = sbr.rel (0) target = $region5
  $region4: #{simple_cnn_forward.4} parent=0 // pred_region
    _
  $region5: #{simple_cnn_forward.4} parent=0 // pred_fallthru
    _
  // Predicated region
  $region6: #{simple_cnn_forward.4} parent=0 // pred_check
    _
  $region7: #{simple_cnn_forward.4} parent=0 // pred_check_branch
    %11 = sbr.rel (0) target = $region9
  $region8: #{simple_cnn_forward.4} parent=0 // pred_region
    _
  $region9: #{simple_cnn_forward.4} parent=0 // pred_fallthru
    _
  // Predicated region
  $region10: #{simple_cnn_forward.4} parent=0 // pred_check
    _
  $region11: #{simple_cnn_forward.4} parent=0 // pred_check_branch
    %13 = sbr.rel (0) target = $region13
  $region12: #{simple_cnn_forward.4} parent=0 // pred_region
    _
  $region13: #{simple_cnn_forward.4} parent=0 // pred_fallthru
    _
  %v15 = vld [vmem:[%s1] sm:$0xff]
  %v16 = vld [vmem:[%s1 + $0x8] sm:$0xff]
  %v17 = vld [vmem:[%s0] sm:$0xff]
  %v18 = vld [vmem:[%s0 + $0x8] sm:$0xff]
  %v19 = vld [vmem:[%s0 + $0x10] sm:$0xff]
  %v20 = vld [vmem:[%s0 + $0x18] sm:$0xff]
  %v21 = vld [vmem:[%s0 + $0x20] sm:$0xff]
  %v22 = vld [vmem:[%s0 + $0x28] sm:$0xff]
  %v23 = vld [vmem:[%s0 + $0x30] sm:$0xff]
  %v24 = vld [vmem:[%s0 + $0x38] sm:$0xff]
  %v25 = vld [vmem:[%s0 + $0x40] sm:$0xff]
  %v26 = vld [vmem:[%s0 + $0x48] sm:$0xff]
  %v27 = vld [vmem:[%s0 + $0x50] sm:$0xff]
  %v28 = vld [vmem:[%s0 + $0x58] sm:$0xff]
  %v29 = vld [vmem:[%s0 + $0x60] sm:$0xff]
  %v30 = vld [vmem:[%s0 + $0x68] sm:$0xff]
  %v31 = vld [vmem:[%s0 + $0x70] sm:$0xff]
  %v32 = vld [vmem:[%s0 + $0x78] sm:$0xff]
  %v33 = vld [vmem:[%s0 + $0x80] sm:$0xff]
  %v34 = vld [vmem:[%s0 + $0x88] sm:$0xff]
  %v35 = vld [vmem:[%s0 + $0x90] sm:$0xff]
  %v36 = vld [vmem:[%s0 + $0x98] sm:$0xff]
  %v37 = vld [vmem:[%s0 + $0xa0] sm:$0xff]
  %v38 = vld [vmem:[%s0 + $0xa8] sm:$0xff]
  %v39 = vld [vmem:[%s0 + $0xb0] sm:$0xff]
  %v40 = vld [vmem:[%s0 + $0xb8] sm:$0xff]
  %v41 = vld [vmem:[%s0 + $0xc0] sm:$0xff]
  %v42 = vld [vmem:[%s0 + $0xc8] sm:$0xff]
  %v43 = vld [vmem:[%s0 + $0xd0] sm:$0xff]
  %v44 = vld [vmem:[%s0 + $0xd8] sm:$0xff]
  %v45 = vld [vmem:[%s0 + $0xe0] sm:$0xff]
  %v46 = vld [vmem:[%s0 + $0xe8] sm:$0xff]
  %v47 = vld [vmem:[%s0 + $0xf0] sm:$0xff]
  %v48 = vld [vmem:[%s0 + $0xf8] sm:$0xff]
  %v49 = vld [vmem:[%s0 + $0x100] sm:$0xff]
  %v50 = vld [vmem:[%s0 + $0x108] sm:$0xff]
  %v51 = vld [vmem:[%s0 + $0x110] sm:$0xff]
  %v52 = vld [vmem:[%s0 + $0x118] sm:$0xff]
  %v53 = vld [vmem:[%s0 + $0x120] sm:$0xff]
  %v54 = vld [vmem:[%s0 + $0x128] sm:$0xff]
  %v55 = vld [vmem:[%s0 + $0x130] sm:$0xff]
  %v56 = vld [vmem:[%s0 + $0x138] sm:$0xff]
  %v57 = vld [vmem:[%s0 + $0x140] sm:$0xff]
  %v58 = vld [vmem:[%s0 + $0x148] sm:$0xff]
  %v59 = vld [vmem:[%s0 + $0x150] sm:$0xff]
  %v60 = vld [vmem:[%s0 + $0x158] sm:$0xff]
  %v61 = vld [vmem:[%s0 + $0x160] sm:$0xff]
  %v62 = vld [vmem:[%s0 + $0x168] sm:$0xff]
  %v63 = vld [vmem:[%s0 + $0x170] sm:$0xff]
  %v64 = vld [vmem:[%s0 + $0x178] sm:$0xff]
  %v65 = vld [vmem:[%s0 + $0x180] sm:$0xff]
  %v66 = vld [vmem:[%s0 + $0x188] sm:$0xff]
  %v67 = vld [vmem:[%s0 + $0x190] sm:$0xff]
  %v68 = vld [vmem:[%s0 + $0x198] sm:$0xff]
  %v69 = vld [vmem:[%s0 + $0x1a0] sm:$0xff]
  %v70 = vld [vmem:[%s0 + $0x1a8] sm:$0xff]
  %v71 = vld [vmem:[%s0 + $0x1b0] sm:$0xff]
  %v72 = vld [vmem:[%s0 + $0x1b8] sm:$0xff]
  %v73 = vld [vmem:[%s0 + $0x1c0] sm:$0xff]
  %v74 = vld [vmem:[%s0 + $0x1c8] sm:$0xff]
  %v75 = vld [vmem:[%s0 + $0x1d0] sm:$0xff]
  %v76 = vld [vmem:[%s0 + $0x1d8] sm:$0xff]
  %v77 = vld [vmem:[%s0 + $0x1e0] sm:$0xff]
  %v78 = vld [vmem:[%s0 + $0x1e8] sm:$0xff]
  %v79 = vld [vmem:[%s0 + $0x1f0] sm:$0xff]
  %v80 = vld [vmem:[%s0 + $0x1f8] sm:$0xff]
  %v81 = vld [vmem:[%s0 + $0x200] sm:$0xff]
  %v82 = vld [vmem:[%s0 + $0x208] sm:$0xff]
  %v83 = vld [vmem:[%s0 + $0x210] sm:$0xff]
  %v84 = vld [vmem:[%s0 + $0x218] sm:$0xff]
  %v85 = vld [vmem:[%s0 + $0x220] sm:$0xff]
  %v86 = vld [vmem:[%s0 + $0x228] sm:$0xff]
  %v87 = vld [vmem:[%s0 + $0x230] sm:$0xff]
  %v88 = vld [vmem:[%s0 + $0x238] sm:$0xff]
  %v89 = vld [vmem:[%s0 + $0x240] sm:$0x77]
  %v90 = vld [vmem:[%s0 + $0x248] sm:$0x77]
  %v91 = vld [vmem:[%s0 + $0x250] sm:$0x77]
  %v92 = vld [vmem:[%s0 + $0x258] sm:$0x77]
  %v93 = vld [vmem:[%s2] sm:$0xff]
  %v94 = vld [vmem:[%s2 + $0x8] sm:$0xff]
  %96 = vset.pattern.permute.xlu0 0
  %97 = vperm.xlu0 %96, %v93
  %v98 = vpop.permute.xlu0 %97
  %101 = vset.pattern.permute.xlu0 0
  %102 = vperm.xlu0 %101, %v94
  %v103 = vpop.permute.xlu0 %102
  %v107 = vunpack.c.l.b16 %v15
  %v108 = vunpack.c.h.b16 %v15
  %v109 = vunpack.c.l.b16 %v16
  %v110 = vunpack.c.h.b16 %v16
  %v111 = vpack.c.b16 %v109, %v107
  %v112 = vpack.c.b16 %v110, %v108
  %v190 = vunpack.c.l.b16 %v17
  %v191 = vunpack.c.h.b16 %v17
  %v192 = vunpack.c.l.b16 %v18
  %v193 = vunpack.c.h.b16 %v18
  %v194 = vunpack.c.l.b16 %v19
  %v195 = vunpack.c.h.b16 %v19
  %v196 = vunpack.c.l.b16 %v20
  %v197 = vunpack.c.h.b16 %v20
  %v198 = vunpack.c.l.b16 %v21
  %v199 = vunpack.c.h.b16 %v21
  %v200 = vunpack.c.l.b16 %v22
  %v201 = vunpack.c.h.b16 %v22
  %v202 = vunpack.c.l.b16 %v23
  %v203 = vunpack.c.h.b16 %v23
  %v204 = vunpack.c.l.b16 %v24
  %v205 = vunpack.c.h.b16 %v24
  %v206 = vunpack.c.l.b16 %v25
  %v207 = vunpack.c.h.b16 %v25
  %v208 = vunpack.c.l.b16 %v26
  %v209 = vunpack.c.h.b16 %v26
  %v210 = vunpack.c.l.b16 %v27
  %v211 = vunpack.c.h.b16 %v27
  %v212 = vunpack.c.l.b16 %v28
  %v213 = vunpack.c.h.b16 %v28
  %v214 = vunpack.c.l.b16 %v29
  %v215 = vunpack.c.h.b16 %v29
  %v216 = vunpack.c.l.b16 %v30
  %v217 = vunpack.c.h.b16 %v30
  %v218 = vunpack.c.l.b16 %v31
  %v219 = vunpack.c.h.b16 %v31
  %v220 = vunpack.c.l.b16 %v32
  %v221 = vunpack.c.h.b16 %v32
  %v222 = vunpack.c.l.b16 %v33
  %v223 = vunpack.c.h.b16 %v33
  %v224 = vunpack.c.l.b16 %v34
  %v225 = vunpack.c.h.b16 %v34
  %v226 = vunpack.c.l.b16 %v35
  %v227 = vunpack.c.h.b16 %v35
  %v228 = vunpack.c.l.b16 %v36
  %v229 = vunpack.c.h.b16 %v36
  %v230 = vunpack.c.l.b16 %v37
  %v231 = vunpack.c.h.b16 %v37
  %v232 = vunpack.c.l.b16 %v38
  %v233 = vunpack.c.h.b16 %v38
  %v234 = vunpack.c.l.b16 %v39
  %v235 = vunpack.c.h.b16 %v39
  %v236 = vunpack.c.l.b16 %v40
  %v237 = vunpack.c.h.b16 %v40
  %v238 = vunpack.c.l.b16 %v41
  %v239 = vunpack.c.h.b16 %v41
  %v240 = vunpack.c.l.b16 %v42
  %v241 = vunpack.c.h.b16 %v42
  %v242 = vunpack.c.l.b16 %v43
  %v243 = vunpack.c.h.b16 %v43
  %v244 = vunpack.c.l.b16 %v44
  %v245 = vunpack.c.h.b16 %v44
  %v246 = vunpack.c.l.b16 %v45
  %v247 = vunpack.c.h.b16 %v45
  %v248 = vunpack.c.l.b16 %v46
  %v249 = vunpack.c.h.b16 %v46
  %v250 = vunpack.c.l.b16 %v47
  %v251 = vunpack.c.h.b16 %v47
  %v252 = vunpack.c.l.b16 %v48
  %v253 = vunpack.c.h.b16 %v48
  %v254 = vunpack.c.l.b16 %v49
  %v255 = vunpack.c.h.b16 %v49
  %v256 = vunpack.c.l.b16 %v50
  %v257 = vunpack.c.h.b16 %v50
  %v258 = vunpack.c.l.b16 %v51
  %v259 = vunpack.c.h.b16 %v51
  %v260 = vunpack.c.l.b16 %v52
  %v261 = vunpack.c.h.b16 %v52
  %v262 = vunpack.c.l.b16 %v53
  %v263 = vunpack.c.h.b16 %v53
  %v264 = vunpack.c.l.b16 %v54
  %v265 = vunpack.c.h.b16 %v54
  %v266 = vunpack.c.l.b16 %v55
  %v267 = vunpack.c.h.b16 %v55
  %v268 = vunpack.c.l.b16 %v56
  %v269 = vunpack.c.h.b16 %v56
  %v270 = vunpack.c.l.b16 %v57
  %v271 = vunpack.c.h.b16 %v57
  %v272 = vunpack.c.l.b16 %v58
  %v273 = vunpack.c.h.b16 %v58
  %v274 = vunpack.c.l.b16 %v59
  %v275 = vunpack.c.h.b16 %v59
  %v276 = vunpack.c.l.b16 %v60
  %v277 = vunpack.c.h.b16 %v60
  %v278 = vunpack.c.l.b16 %v61
  %v279 = vunpack.c.h.b16 %v61
  %v280 = vunpack.c.l.b16 %v62
  %v281 = vunpack.c.h.b16 %v62
  %v282 = vunpack.c.l.b16 %v63
  %v283 = vunpack.c.h.b16 %v63
  %v284 = vunpack.c.l.b16 %v64
  %v285 = vunpack.c.h.b16 %v64
  %v286 = vunpack.c.l.b16 %v65
  %v287 = vunpack.c.h.b16 %v65
  %v288 = vunpack.c.l.b16 %v66
  %v289 = vunpack.c.h.b16 %v66
  %v290 = vunpack.c.l.b16 %v67
  %v291 = vunpack.c.h.b16 %v67
  %v292 = vunpack.c.l.b16 %v68
  %v293 = vunpack.c.h.b16 %v68
  %v294 = vunpack.c.l.b16 %v69
  %v295 = vunpack.c.h.b16 %v69
  %v296 = vunpack.c.l.b16 %v70
  %v297 = vunpack.c.h.b16 %v70
  %v298 = vunpack.c.l.b16 %v71
  %v299 = vunpack.c.h.b16 %v71
  %v300 = vunpack.c.l.b16 %v72
  %v301 = vunpack.c.h.b16 %v72
  %v302 = vunpack.c.l.b16 %v73
  %v303 = vunpack.c.h.b16 %v73
  %v304 = vunpack.c.l.b16 %v74
  %v305 = vunpack.c.h.b16 %v74
  %v306 = vunpack.c.l.b16 %v75
  %v307 = vunpack.c.h.b16 %v75
  %v308 = vunpack.c.l.b16 %v76
  %v309 = vunpack.c.h.b16 %v76
  %v310 = vunpack.c.l.b16 %v77
  %v311 = vunpack.c.h.b16 %v77
  %v312 = vunpack.c.l.b16 %v78
  %v313 = vunpack.c.h.b16 %v78
  %v314 = vunpack.c.l.b16 %v79
  %v315 = vunpack.c.h.b16 %v79
  %v316 = vunpack.c.l.b16 %v80
  %v317 = vunpack.c.h.b16 %v80
  %v318 = vunpack.c.l.b16 %v81
  %v319 = vunpack.c.h.b16 %v81
  %v320 = vunpack.c.l.b16 %v82
  %v321 = vunpack.c.h.b16 %v82
  %v322 = vunpack.c.l.b16 %v83
  %v323 = vunpack.c.h.b16 %v83
  %v324 = vunpack.c.l.b16 %v84
  %v325 = vunpack.c.h.b16 %v84
  %v326 = vunpack.c.l.b16 %v85
  %v327 = vunpack.c.h.b16 %v85
  %v328 = vunpack.c.l.b16 %v86
  %v329 = vunpack.c.h.b16 %v86
  %v330 = vunpack.c.l.b16 %v87
  %v331 = vunpack.c.h.b16 %v87
  %v332 = vunpack.c.l.b16 %v88
  %v333 = vunpack.c.h.b16 %v88
  %v334 = vunpack.c.l.b16 %v89
  %v335 = vunpack.c.h.b16 %v89
  %v336 = vunpack.c.l.b16 %v90
  %v337 = vunpack.c.h.b16 %v90
  %v338 = vunpack.c.l.b16 %v91
  %v339 = vunpack.c.h.b16 %v91
  %v340 = vunpack.c.l.b16 %v92
  %v341 = vunpack.c.h.b16 %v92
  %v342 = vpack.c.b16 %v198, %v190
  %v343 = vpack.c.b16 %v199, %v191
  %v344 = vpack.c.b16 %v200, %v192
  %v345 = vpack.c.b16 %v201, %v193
  %v346 = vpack.c.b16 %v202, %v194
  %v347 = vpack.c.b16 %v203, %v195
  %v348 = vpack.c.b16 %v204, %v196
  %v349 = vpack.c.b16 %v205, %v197
  %v350 = vpack.c.b16 %v214, %v206
  %v351 = vpack.c.b16 %v215, %v207
  %v352 = vpack.c.b16 %v216, %v208
  %v353 = vpack.c.b16 %v217, %v209
  %v354 = vpack.c.b16 %v218, %v210
  %v355 = vpack.c.b16 %v219, %v211
  %v356 = vpack.c.b16 %v220, %v212
  %v357 = vpack.c.b16 %v221, %v213
  %v358 = vpack.c.b16 %v230, %v222
  %v359 = vpack.c.b16 %v231, %v223
  %v360 = vpack.c.b16 %v232, %v224
  %v361 = vpack.c.b16 %v233, %v225
  %v362 = vpack.c.b16 %v234, %v226
  %v363 = vpack.c.b16 %v235, %v227
  %v364 = vpack.c.b16 %v236, %v228
  %v365 = vpack.c.b16 %v237, %v229
  %v366 = vpack.c.b16 %v246, %v238
  %v367 = vpack.c.b16 %v247, %v239
  %v368 = vpack.c.b16 %v248, %v240
  %v369 = vpack.c.b16 %v249, %v241
  %v370 = vpack.c.b16 %v250, %v242
  %v371 = vpack.c.b16 %v251, %v243
  %v372 = vpack.c.b16 %v252, %v244
  %v373 = vpack.c.b16 %v253, %v245
  %v374 = vpack.c.b16 %v262, %v254
  %v375 = vpack.c.b16 %v263, %v255
  %v376 = vpack.c.b16 %v264, %v256
  %v377 = vpack.c.b16 %v265, %v257
  %v378 = vpack.c.b16 %v266, %v258
  %v379 = vpack.c.b16 %v267, %v259
  %v380 = vpack.c.b16 %v268, %v260
  %v381 = vpack.c.b16 %v269, %v261
  %v382 = vpack.c.b16 %v278, %v270
  %v383 = vpack.c.b16 %v279, %v271
  %v384 = vpack.c.b16 %v280, %v272
  %v385 = vpack.c.b16 %v281, %v273
  %v386 = vpack.c.b16 %v282, %v274
  %v387 = vpack.c.b16 %v283, %v275
  %v388 = vpack.c.b16 %v284, %v276
  %v389 = vpack.c.b16 %v285, %v277
  %v390 = vpack.c.b16 %v294, %v286
  %v391 = vpack.c.b16 %v295, %v287
  %v392 = vpack.c.b16 %v296, %v288
  %v393 = vpack.c.b16 %v297, %v289
  %v394 = vpack.c.b16 %v298, %v290
  %v395 = vpack.c.b16 %v299, %v291
  %v396 = vpack.c.b16 %v300, %v292
  %v397 = vpack.c.b16 %v301, %v293
  %v398 = vpack.c.b16 %v310, %v302
  %v399 = vpack.c.b16 %v311, %v303
  %v400 = vpack.c.b16 %v312, %v304
  %v401 = vpack.c.b16 %v313, %v305
  %v402 = vpack.c.b16 %v314, %v306
  %v403 = vpack.c.b16 %v315, %v307
  %v404 = vpack.c.b16 %v316, %v308
  %v405 = vpack.c.b16 %v317, %v309
  %v406 = vpack.c.b16 %v326, %v318
  %v407 = vpack.c.b16 %v327, %v319
  %v408 = vpack.c.b16 %v328, %v320
  %v409 = vpack.c.b16 %v329, %v321
  %v410 = vpack.c.b16 %v330, %v322
  %v411 = vpack.c.b16 %v331, %v323
  %v412 = vpack.c.b16 %v332, %v324
  %v413 = vpack.c.b16 %v333, %v325
  %v414 = vpack.c.b16 %v334, %v334
  %v415 = vpack.c.b16 %v335, %v335
  %v416 = vpack.c.b16 %v336, %v336
  %v417 = vpack.c.b16 %v337, %v337
  %v418 = vpack.c.b16 %v338, %v338
  %v419 = vpack.c.b16 %v339, %v339
  %v420 = vpack.c.b16 %v340, %v340
  %v421 = vpack.c.b16 %v341, %v341
  %vm494 = vcmask 179200
  %v496 = vsel %vm494, %v112, 0
  %vm498 = vcmask 1042432
  %v500 = vsel %vm498, %v414, 0
  %v503 = vsel %vm498, %v415, 0
  %v506 = vsel %vm498, %v416, 0
  %v509 = vsel %vm498, %v417, 0
  %v512 = vsel %vm498, %v418, 0
  %v515 = vsel %vm498, %v419, 0
  %v518 = vsel %vm498, %v420, 0
  %v521 = vsel %vm498, %v421, 0
  %523 = vmatprep.subr.bf16.mxu0 %v343
  %524 = vmatpush1.bf16.msra.mxu0 %v342
  %525 = vmatprep.subr.bf16.mxu0 %v351
  %526 = vmatpush1.bf16.msra.mxu0 %v350
  %527 = vmatprep.subr.bf16.mxu0 %v359
  %528 = vmatpush1.bf16.msra.mxu0 %v358
  %529 = vmatprep.subr.bf16.mxu0 %v367
  %530 = vmatpush1.bf16.msra.mxu0 %v366
  %531 = vmatprep.subr.bf16.mxu0 %v375
  %532 = vmatpush1.bf16.msra.mxu0 %v374
  %533 = vmatprep.subr.bf16.mxu0 %v383
  %534 = vmatpush1.bf16.msra.mxu0 %v382
  %535 = vmatprep.subr.bf16.mxu0 %v391
  %536 = vmatpush1.bf16.msra.mxu0 %v390
  %537 = vmatprep.subr.bf16.mxu0 %v399
  %538 = vmatpush1.bf16.msra.mxu0 %v398
  %539 = vmatprep.subr.bf16.mxu0 %v407
  %540 = vmatpush1.bf16.msra.mxu0 %v406
  %541 = vmatprep.subr.bf16.mxu0 %v503
  %542 = vmatpush1.bf16.msra.mxu0 %v500
  %543 = vmatprep.subr.bf16.mxu0 0
  %544 = vmatpush1.bf16.msra.mxu0 0
  %545 = vmatprep.subr.bf16.mxu0 0
  %546 = vmatpush1.bf16.msra.mxu0 0
  %547 = vmatprep.subr.bf16.mxu0 0
  %548 = vmatpush1.bf16.msra.mxu0 0
  %549 = vmatprep.subr.bf16.mxu0 0
  %550 = vmatpush1.bf16.msra.mxu0 0
  %551 = vmatprep.subr.bf16.mxu0 0
  %552 = vmatpush1.bf16.msra.mxu0 0
  %553 = vmatprep.subr.bf16.mxu0 0
  %554 = vmatpush1.bf16.msra.mxu0 0
  %555 = vmatprep.mubr.bf16.mxu0 %v496
  %556 = vmatmul.mubr.bf16.gmra.mrb[0].mxu0 %v111
  %v557 = vpop.f32.mrb[0].mxu0
  %v558 = vadd.f32 %v98, %v557
  %v559 = vpop.f32.mrb[0].mxu0
  %v560 = vadd.f32 %v98, %v559
  %v561 = vpop.f32.mrb[0].mxu0
  %v562 = vadd.f32 %v103, %v561
  %v563 = vpop.f32.mrb[0].mxu0
  %v564 = vadd.f32 %v103, %v563
  %565 = vdwg.mxu0
  %566 = vmatprep.subr.bf16.mxu0 %v345
  %567 = vmatpush1.bf16.msra.mxu0 %v344
  %568 = vmatprep.subr.bf16.mxu0 %v353
  %569 = vmatpush1.bf16.msra.mxu0 %v352
  %570 = vmatprep.subr.bf16.mxu0 %v361
  %571 = vmatpush1.bf16.msra.mxu0 %v360
  %572 = vmatprep.subr.bf16.mxu0 %v369
  %573 = vmatpush1.bf16.msra.mxu0 %v368
  %574 = vmatprep.subr.bf16.mxu0 %v377
  %575 = vmatpush1.bf16.msra.mxu0 %v376
  %576 = vmatprep.subr.bf16.mxu0 %v385
  %577 = vmatpush1.bf16.msra.mxu0 %v384
  %578 = vmatprep.subr.bf16.mxu0 %v393
  %579 = vmatpush1.bf16.msra.mxu0 %v392
  %580 = vmatprep.subr.bf16.mxu0 %v401
  %581 = vmatpush1.bf16.msra.mxu0 %v400
  %582 = vmatprep.subr.bf16.mxu0 %v409
  %583 = vmatpush1.bf16.msra.mxu0 %v408
  %584 = vmatprep.subr.bf16.mxu0 %v509
  %585 = vmatpush1.bf16.msra.mxu0 %v506
  %586 = vmatprep.subr.bf16.mxu0 0
  %587 = vmatpush1.bf16.msra.mxu0 0
  %588 = vmatprep.subr.bf16.mxu0 0
  %589 = vmatpush1.bf16.msra.mxu0 0
  %590 = vmatprep.subr.bf16.mxu0 0
  %591 = vmatpush1.bf16.msra.mxu0 0
  %592 = vmatprep.subr.bf16.mxu0 0
  %593 = vmatpush1.bf16.msra.mxu0 0
  %594 = vmatprep.subr.bf16.mxu0 0
  %595 = vmatpush1.bf16.msra.mxu0 0
  %596 = vmatprep.subr.bf16.mxu0 0
  %597 = vmatpush1.bf16.msra.mxu0 0
  %598 = vmatprep.mubr.bf16.mxu0 %v496
  %599 = vmatmul.mubr.bf16.gmra.mrb[0].mxu0 %v111
  %v600 = vpop.f32.mrb[0].mxu0
  %v601 = vadd.f32 %v98, %v600
  %v602 = vpop.f32.mrb[0].mxu0
  %v603 = vadd.f32 %v98, %v602
  %v604 = vpop.f32.mrb[0].mxu0
  %v605 = vadd.f32 %v103, %v604
  %v606 = vpop.f32.mrb[0].mxu0
  %v607 = vadd.f32 %v103, %v606
  %608 = vdwg.mxu0
  %609 = vmatprep.subr.bf16.mxu0 %v347
  %610 = vmatpush1.bf16.msra.mxu0 %v346
  %611 = vmatprep.subr.bf16.mxu0 %v355
  %612 = vmatpush1.bf16.msra.mxu0 %v354
  %613 = vmatprep.subr.bf16.mxu0 %v363
  %614 = vmatpush1.bf16.msra.mxu0 %v362
  %615 = vmatprep.subr.bf16.mxu0 %v371
  %616 = vmatpush1.bf16.msra.mxu0 %v370
  %617 = vmatprep.subr.bf16.mxu0 %v379
  %618 = vmatpush1.bf16.msra.mxu0 %v378
  %619 = vmatprep.subr.bf16.mxu0 %v387
  %620 = vmatpush1.bf16.msra.mxu0 %v386
  %621 = vmatprep.subr.bf16.mxu0 %v395
  %622 = vmatpush1.bf16.msra.mxu0 %v394
  %623 = vmatprep.subr.bf16.mxu0 %v403
  %624 = vmatpush1.bf16.msra.mxu0 %v402
  %625 = vmatprep.subr.bf16.mxu0 %v411
  %626 = vmatpush1.bf16.msra.mxu0 %v410
  %627 = vmatprep.subr.bf16.mxu0 %v515
  %628 = vmatpush1.bf16.msra.mxu0 %v512
  %629 = vmatprep.subr.bf16.mxu0 0
  %630 = vmatpush1.bf16.msra.mxu0 0
  %631 = vmatprep.subr.bf16.mxu0 0
  %632 = vmatpush1.bf16.msra.mxu0 0
  %633 = vmatprep.subr.bf16.mxu0 0
  %634 = vmatpush1.bf16.msra.mxu0 0
  %635 = vmatprep.subr.bf16.mxu0 0
  %636 = vmatpush1.bf16.msra.mxu0 0
  %637 = vmatprep.subr.bf16.mxu0 0
  %638 = vmatpush1.bf16.msra.mxu0 0
  %639 = vmatprep.subr.bf16.mxu0 0
  %640 = vmatpush1.bf16.msra.mxu0 0
  %641 = vmatprep.mubr.bf16.mxu0 %v496
  %642 = vmatmul.mubr.bf16.gmra.mrb[0].mxu0 %v111
  %v643 = vpop.f32.mrb[0].mxu0
  %v644 = vadd.f32 %v98, %v643
  %v645 = vpop.f32.mrb[0].mxu0
  %v646 = vadd.f32 %v98, %v645
  %v647 = vpop.f32.mrb[0].mxu0
  %v648 = vadd.f32 %v103, %v647
  %v649 = vpop.f32.mrb[0].mxu0
  %v650 = vadd.f32 %v103, %v649
  %651 = vdwg.mxu0
  %652 = vmatprep.subr.bf16.mxu0 %v349
  %653 = vmatpush1.bf16.msra.mxu0 %v348
  %654 = vmatprep.subr.bf16.mxu0 %v357
  %655 = vmatpush1.bf16.msra.mxu0 %v356
  %656 = vmatprep.subr.bf16.mxu0 %v365
  %657 = vmatpush1.bf16.msra.mxu0 %v364
  %658 = vmatprep.subr.bf16.mxu0 %v373
  %659 = vmatpush1.bf16.msra.mxu0 %v372
  %660 = vmatprep.subr.bf16.mxu0 %v381
  %661 = vmatpush1.bf16.msra.mxu0 %v380
  %662 = vmatprep.subr.bf16.mxu0 %v389
  %663 = vmatpush1.bf16.msra.mxu0 %v388
  %664 = vmatprep.subr.bf16.mxu0 %v397
  %665 = vmatpush1.bf16.msra.mxu0 %v396
  %666 = vmatprep.subr.bf16.mxu0 %v405
  %667 = vmatpush1.bf16.msra.mxu0 %v404
  %668 = vmatprep.subr.bf16.mxu0 %v413
  %669 = vmatpush1.bf16.msra.mxu0 %v412
  %670 = vmatprep.subr.bf16.mxu0 %v521
  %671 = vmatpush1.bf16.msra.mxu0 %v518
  %672 = vmatprep.subr.bf16.mxu0 0
  %673 = vmatpush1.bf16.msra.mxu0 0
  %674 = vmatprep.subr.bf16.mxu0 0
  %675 = vmatpush1.bf16.msra.mxu0 0
  %676 = vmatprep.subr.bf16.mxu0 0
  %677 = vmatpush1.bf16.msra.mxu0 0
  %678 = vmatprep.subr.bf16.mxu0 0
  %679 = vmatpush1.bf16.msra.mxu0 0
  %680 = vmatprep.subr.bf16.mxu0 0
  %681 = vmatpush1.bf16.msra.mxu0 0
  %682 = vmatprep.subr.bf16.mxu0 0
  %683 = vmatpush1.bf16.msra.mxu0 0
  %684 = vmatprep.mubr.bf16.mxu0 %v496
  %685 = vmatmul.mubr.bf16.gmra.mrb[0].mxu0 %v111
  %v686 = vpop.f32.mrb[0].mxu0
  %v687 = vadd.f32 %v98, %v686
  %v688 = vpop.f32.mrb[0].mxu0
  %v689 = vadd.f32 %v98, %v688
  %v690 = vpop.f32.mrb[0].mxu0
  %v691 = vadd.f32 %v103, %v690
  %v692 = vpop.f32.mrb[0].mxu0
  %v693 = vadd.f32 %v103, %v692
  %694 = vdwg.mxu0
  %v695 = vmax.f32 %v558, 0.0
  %v696 = vmax.f32 %v560, 0.0
  %v697 = vmax.f32 %v601, 0.0
  %v698 = vmax.f32 %v603, 0.0
  %v699 = vmax.f32 %v644, 0.0
  %v700 = vmax.f32 %v646, 0.0
  %v701 = vmax.f32 %v687, 0.0
  %v702 = vmax.f32 %v689, 0.0
  %v703 = vmax.f32 %v562, 0.0
  %v704 = vmax.f32 %v564, 0.0
  %v705 = vmax.f32 %v605, 0.0
  %v706 = vmax.f32 %v607, 0.0
  %v707 = vmax.f32 %v648, 0.0
  %v708 = vmax.f32 %v650, 0.0
  %v709 = vmax.f32 %v691, 0.0
  %v710 = vmax.f32 %v693, 0.0
  %v711 = vmax.f32 %v695, %v697
  %v712 = vmax.f32 %v696, %v698
  %v713 = vmax.f32 %v703, %v705
  %v714 = vmax.f32 %v704, %v706
  %v715 = vmax.f32 %v699, %v701
  %v716 = vmax.f32 %v700, %v702
  %v717 = vmax.f32 %v707, %v709
  %v718 = vmax.f32 %v708, %v710
  %v719 = vmax.f32 %v711, %v715
  %v720 = vmax.f32 %v712, %v716
  %v721 = vmax.f32 %v713, %v717
  %v722 = vmax.f32 %v714, %v718
  %723 = vst [vmem:[%s3] sm:$0xff] %v719
  %724 = vst [vmem:[%s3 + $0x8] sm:$0xff] %v720
  %725 = vst [vmem:[%s3 + $0x10] sm:$0xff] %v721
  %726 = vst [vmem:[%s3 + $0x18] sm:$0xff] %v722
  // Predicated region
  $region14: #{simple_cnn_forward.4} parent=0 // pred_check
    _
  $region15: #{simple_cnn_forward.4} parent=0 // pred_check_branch
    %728 = sbr.rel (0) target = $region17
  $region16: #{simple_cnn_forward.4} parent=0 // pred_region
    _
  $region17: #{simple_cnn_forward.4} parent=0 // pred_fallthru
    _
  // Predicated region
  $region18: #{simple_cnn_forward.4} parent=0 // pred_check
    _
  $region19: #{simple_cnn_forward.4} parent=0 // pred_check_branch
    %730 = sbr.rel (0) target = $region21
  $region20: #{simple_cnn_forward.4} parent=0 // pred_region
    _
  $region21: #{simple_cnn_forward.4} parent=0 // pred_fallthru
    _

// kernel: simple_cnn_forward.5
$region0: #{simple_cnn_forward.5}
  #allocation0 [shape = 'u32[]', space=smem, size = 0x4, offset = 0x4, fixed_abs, tag = 'smem constant byte address 0x4 - core index']
  #allocation1 [shape = 'u32[144,128]{1,0:T(1,128)}', space=vmem, size = 0x12000, scoped, tag = 'internal scratch']
  %s0 = inlined_call_operand.vmem [shape: bf16[2,400], index: 0, kind: input, shape index: {}]
  %s1 = inlined_call_operand.vmem [shape: bf16[400,128], index: 1, kind: input, shape index: {}]
  %s2 = inlined_call_operand.vmem [shape: f32[1,128], index: 2, kind: input, shape index: {}]
  %s3 = inlined_call_operand.vmem [shape: bf16[128,128], index: 3, kind: input, shape index: {}]
  %s4 = inlined_call_operand.vmem [shape: f32[1,128], index: 4, kind: input, shape index: {}]
  %s5 = inlined_call_operand.vmem [shape: bf16[128,128], index: 5, kind: input, shape index: {}]
  %s6 = inlined_call_operand.vmem [shape: f32[1,128], index: 6, kind: input, shape index: {}]
  %s7 = inlined_call_operand.hbm [shape: f32[2,128], index: 7, kind: output, shape index: {}]
  %s8 = sld [smem:[#allocation0]]
  $region38: #{simple_cnn_forward.5} parent=0
    _
  %s10 = ssub.s32 1, %s8
  %s11 = scalar_select 0, %s10, %s8
  $region1: #{simple_cnn_forward.5} parent=0
    #allocation2 [shape = 'u8[1024]{0}', space=vmem, size = 0x400, scoped, tag = 'output window, operand 0, single buffered']
    #allocation3 [shape = 's32[1]{0}', space=sflag, size = 0x4, scoped, tag = 'scoped memory for simple_cnn_forward.5']
    %12 = vsyncpa [#allocation3], 0
    // Predicated region
    $region2: #{simple_cnn_forward.5} parent=1 // pred_check
      _
    $region3: #{simple_cnn_forward.5} parent=1 // pred_check_branch
      %14 = sbr.rel (0) target = $region5
    $region4: #{simple_cnn_forward.5} parent=1 // pred_region
      _
    $region5: #{simple_cnn_forward.5} parent=1 // pred_fallthru
      _
    // Predicated region
    $region6: #{simple_cnn_forward.5} parent=1 // pred_check
      _
    $region7: #{simple_cnn_forward.5} parent=1 // pred_check_branch
      %16 = sbr.rel (0) target = $region9
    $region8: #{simple_cnn_forward.5} parent=1 // pred_region
      _
    $region9: #{simple_cnn_forward.5} parent=1 // pred_fallthru
      _
    // Predicated region
    $region10: #{simple_cnn_forward.5} parent=1 // pred_check
      _
    $region11: #{simple_cnn_forward.5} parent=1 // pred_check_branch
      %18 = sbr.rel (0) target = $region13
    $region12: #{simple_cnn_forward.5} parent=1 // pred_region
      _
    $region13: #{simple_cnn_forward.5} parent=1 // pred_fallthru
      _
    // Predicated region
    $region14: #{simple_cnn_forward.5} parent=1 // pred_check
      _
    $region15: #{simple_cnn_forward.5} parent=1 // pred_check_branch
      %20 = sbr.rel (0) target = $region17
    $region16: #{simple_cnn_forward.5} parent=1 // pred_region
      _
    $region17: #{simple_cnn_forward.5} parent=1 // pred_fallthru
      _
    // Predicated region
    $region18: #{simple_cnn_forward.5} parent=1 // pred_check
      _
    $region19: #{simple_cnn_forward.5} parent=1 // pred_check_branch
      %22 = sbr.rel (0) target = $region21
    $region20: #{simple_cnn_forward.5} parent=1 // pred_region
      _
    $region21: #{simple_cnn_forward.5} parent=1 // pred_fallthru
      _
    // Predicated region
    $region22: #{simple_cnn_forward.5} parent=1 // pred_check
      _
    $region23: #{simple_cnn_forward.5} parent=1 // pred_check_branch
      %24 = sbr.rel (0) target = $region25
    $region24: #{simple_cnn_forward.5} parent=1 // pred_region
      _
    $region25: #{simple_cnn_forward.5} parent=1 // pred_fallthru
      _
    // Predicated region
    $region26: #{simple_cnn_forward.5} parent=1 // pred_check
      _
    $region27: #{simple_cnn_forward.5} parent=1 // pred_check_branch
      %26 = sbr.rel (0) target = $region29
    $region28: #{simple_cnn_forward.5} parent=1 // pred_region
      _
    $region29: #{simple_cnn_forward.5} parent=1 // pred_fallthru
      _
    %v28 = vld [vmem:[%s0] sm:$0xf]
    %v29 = vld [vmem:[%s1] sm:$0xf]
    %v30 = vld [vmem:[%s1 + $0x4] sm:$0xf]
    %v31 = vld [vmem:[%s1 + $0x8] sm:$0xf]
    %v32 = vld [vmem:[%s1 + $0xc] sm:$0xf]
    %v33 = vld [vmem:[%s1 + $0x10] sm:$0xf]
    %v34 = vld [vmem:[%s1 + $0x14] sm:$0xf]
    %v35 = vld [vmem:[%s1 + $0x18] sm:$0xf]
    %v36 = vld [vmem:[%s1 + $0x1c] sm:$0xf]
    %v37 = vld [vmem:[%s1 + $0x20] sm:$0xf]
    %v38 = vld [vmem:[%s1 + $0x24] sm:$0xf]
    %v39 = vld [vmem:[%s1 + $0x28] sm:$0xf]
    %v40 = vld [vmem:[%s1 + $0x2c] sm:$0xf]
    %v41 = vld [vmem:[%s1 + $0x30] sm:$0xf]
    %v42 = vld [vmem:[%s1 + $0x34] sm:$0xf]
    %v43 = vld [vmem:[%s1 + $0x38] sm:$0xf]
    %v44 = vld [vmem:[%s1 + $0x3c] sm:$0xf]
    %v45 = vld [vmem:[%s1 + $0x40] sm:$0xf]
    %v46 = vld [vmem:[%s1 + $0x44] sm:$0xf]
    %v47 = vld [vmem:[%s1 + $0x48] sm:$0xf]
    %v48 = vld [vmem:[%s1 + $0x4c] sm:$0xf]
    %v49 = vld [vmem:[%s1 + $0x50] sm:$0xf]
    %v50 = vld [vmem:[%s1 + $0x54] sm:$0xf]
    %v51 = vld [vmem:[%s1 + $0x58] sm:$0xf]
    %v52 = vld [vmem:[%s1 + $0x5c] sm:$0xf]
    %v53 = vld [vmem:[%s1 + $0x60] sm:$0xf]
    %v54 = vld [vmem:[%s1 + $0x64] sm:$0xf]
    %v55 = vld [vmem:[%s1 + $0x68] sm:$0xf]
    %v56 = vld [vmem:[%s1 + $0x6c] sm:$0xf]
    %v57 = vld [vmem:[%s1 + $0x70] sm:$0xf]
    %v58 = vld [vmem:[%s1 + $0x74] sm:$0xf]
    %v59 = vld [vmem:[%s1 + $0x78] sm:$0xf]
    %v60 = vld [vmem:[%s1 + $0x7c] sm:$0xf]
    %v61 = vld [vmem:[%s1 + $0x80] sm:$0xf]
    %v62 = vld [vmem:[%s1 + $0x84] sm:$0xf]
    %v63 = vld [vmem:[%s1 + $0x88] sm:$0xf]
    %v64 = vld [vmem:[%s1 + $0x8c] sm:$0xf]
    %v65 = vld [vmem:[%s1 + $0x90] sm:$0xf]
    %v66 = vld [vmem:[%s1 + $0x94] sm:$0xf]
    %v67 = vld [vmem:[%s1 + $0x98] sm:$0xf]
    %v68 = vld [vmem:[%s1 + $0x9c] sm:$0xf]
    %v69 = vld [vmem:[%s1 + $0xa0] sm:$0xf]
    %v70 = vld [vmem:[%s1 + $0xa4] sm:$0xf]
    %v71 = vld [vmem:[%s1 + $0xa8] sm:$0xf]
    %v72 = vld [vmem:[%s1 + $0xac] sm:$0xf]
    %v73 = vld [vmem:[%s1 + $0xb0] sm:$0xf]
    %v74 = vld [vmem:[%s1 + $0xb4] sm:$0xf]
    %v75 = vld [vmem:[%s1 + $0xb8] sm:$0xf]
    %v76 = vld [vmem:[%s1 + $0xbc] sm:$0xf]
    %v77 = vld [vmem:[%s1 + $0xc0] sm:$0xf]
    %v78 = vld [vmem:[%s1 + $0xc4] sm:$0xf]
    %v79 = vld [vmem:[%s2] sm:$0x1]
    %v81 = vlaneseq
    %v82 = vshrl.u32 %v81, 7
    %v83 = vsub.s32 0, %v82
    %v84 = vrot.slane %v79, %v83
    %v88 = vunpack.c.l.s4 1966171168
    %v89 = vunpack.c.0.s8 %v88
    %v90 = vlaneseq
    %v91 = vshrl.u32 %v90, 7
    %v92 = vsub.s32 %v89, %v91
    %v93 = vrot.slane %v28, %v92
    %v94 = vcombine.high %v93, %v93
    %v96 = vunpack.c.l.s4 1966171168
    %v97 = vunpack.c.0.s8 %v96
    %v98 = vlaneseq
    %v99 = vshrl.u32 %v98, 7
    %v100 = vsub.s32 %v97, %v99
    %v101 = vrot.slane %v93, %v100
    %v103 = vunpack.c.l.s4 1966171168
    %v104 = vunpack.c.0.s8 %v103
    %v105 = vlaneseq
    %v106 = vshrl.u32 %v105, 7
    %v107 = vsub.s32 %v104, %v106
    %v108 = vrot.slane %v94, %v107
    %v109 = vcombine.high %v101, %v101
    %v110 = vcombine.high %v108, %v108
    %v164 = vunpack.c.l.b16 %v29
    %v165 = vunpack.c.l.b16 %v30
    %v166 = vunpack.c.l.b16 %v31
    %v167 = vunpack.c.l.b16 %v32
    %v168 = vunpack.c.l.b16 %v33
    %v169 = vunpack.c.l.b16 %v34
    %v170 = vunpack.c.l.b16 %v35
    %v171 = vunpack.c.l.b16 %v36
    %v172 = vunpack.c.l.b16 %v37
    %v173 = vunpack.c.l.b16 %v38
    %v174 = vunpack.c.l.b16 %v39
    %v175 = vunpack.c.l.b16 %v40
    %v176 = vunpack.c.l.b16 %v41
    %v177 = vunpack.c.l.b16 %v42
    %v178 = vunpack.c.l.b16 %v43
    %v179 = vunpack.c.l.b16 %v44
    %v180 = vunpack.c.l.b16 %v45
    %v181 = vunpack.c.l.b16 %v46
    %v182 = vunpack.c.l.b16 %v47
    %v183 = vunpack.c.l.b16 %v48
    %v184 = vunpack.c.l.b16 %v49
    %v185 = vunpack.c.l.b16 %v50
    %v186 = vunpack.c.l.b16 %v51
    %v187 = vunpack.c.l.b16 %v52
    %v188 = vunpack.c.l.b16 %v53
    %v189 = vunpack.c.l.b16 %v54
    %v190 = vunpack.c.l.b16 %v55
    %v191 = vunpack.c.l.b16 %v56
    %v192 = vunpack.c.l.b16 %v57
    %v193 = vunpack.c.l.b16 %v58
    %v194 = vunpack.c.l.b16 %v59
    %v195 = vunpack.c.l.b16 %v60
    %v196 = vunpack.c.l.b16 %v61
    %v197 = vunpack.c.l.b16 %v62
    %v198 = vunpack.c.l.b16 %v63
    %v199 = vunpack.c.l.b16 %v64
    %v200 = vunpack.c.l.b16 %v65
    %v201 = vunpack.c.l.b16 %v66
    %v202 = vunpack.c.l.b16 %v67
    %v203 = vunpack.c.l.b16 %v68
    %v204 = vunpack.c.l.b16 %v69
    %v205 = vunpack.c.l.b16 %v70
    %v206 = vunpack.c.l.b16 %v71
    %v207 = vunpack.c.l.b16 %v72
    %v208 = vunpack.c.l.b16 %v73
    %v209 = vunpack.c.l.b16 %v74
    %v210 = vunpack.c.l.b16 %v75
    %v211 = vunpack.c.l.b16 %v76
    %v212 = vunpack.c.l.b16 %v77
    %v213 = vunpack.c.l.b16 %v78
    %v214 = vpack.c.b16 %v165, %v164
    %v215 = vpack.c.b16 %v167, %v166
    %v216 = vpack.c.b16 %v169, %v168
    %v217 = vpack.c.b16 %v171, %v170
    %v218 = vpack.c.b16 %v173, %v172
    %v219 = vpack.c.b16 %v175, %v174
    %v220 = vpack.c.b16 %v177, %v176
    %v221 = vpack.c.b16 %v179, %v178
    %v222 = vpack.c.b16 %v181, %v180
    %v223 = vpack.c.b16 %v183, %v182
    %v224 = vpack.c.b16 %v185, %v184
    %v225 = vpack.c.b16 %v187, %v186
    %v226 = vpack.c.b16 %v189, %v188
    %v227 = vpack.c.b16 %v191, %v190
    %v228 = vpack.c.b16 %v193, %v192
    %v229 = vpack.c.b16 %v195, %v194
    %v230 = vpack.c.b16 %v197, %v196
    %v231 = vpack.c.b16 %v199, %v198
    %v232 = vpack.c.b16 %v201, %v200
    %v233 = vpack.c.b16 %v203, %v202
    %v234 = vpack.c.b16 %v205, %v204
    %v235 = vpack.c.b16 %v207, %v206
    %v236 = vpack.c.b16 %v209, %v208
    %v237 = vpack.c.b16 %v211, %v210
    %v238 = vpack.c.b16 %v213, %v212
    %vm264 = vcmask 130048
    %v266 = vsel %vm264, %v110, 0
    %268 = vmatprep.subr.bf16.mxu0 0
    %269 = vmatpush1.bf16.msra.mxu0 %v214
    %270 = vmatprep.subr.bf16.mxu0 0
    %271 = vmatpush1.bf16.msra.mxu0 %v215
    %272 = vmatprep.subr.bf16.mxu0 0
    %273 = vmatpush1.bf16.msra.mxu0 %v216
    %274 = vmatprep.subr.bf16.mxu0 0
    %275 = vmatpush1.bf16.msra.mxu0 %v217
    %276 = vmatprep.subr.bf16.mxu0 0
    %277 = vmatpush1.bf16.msra.mxu0 %v218
    %278 = vmatprep.subr.bf16.mxu0 0
    %279 = vmatpush1.bf16.msra.mxu0 %v219
    %280 = vmatprep.subr.bf16.mxu0 0
    %281 = vmatpush1.bf16.msra.mxu0 %v220
    %282 = vmatprep.subr.bf16.mxu0 0
    %283 = vmatpush1.bf16.msra.mxu0 %v221
    %284 = vmatprep.subr.bf16.mxu0 0
    %285 = vmatpush1.bf16.msra.mxu0 %v222
    %286 = vmatprep.subr.bf16.mxu0 0
    %287 = vmatpush1.bf16.msra.mxu0 %v223
    %288 = vmatprep.subr.bf16.mxu0 0
    %289 = vmatpush1.bf16.msra.mxu0 %v224
    %290 = vmatprep.subr.bf16.mxu0 0
    %291 = vmatpush1.bf16.msra.mxu0 %v225
    %292 = vmatprep.subr.bf16.mxu0 0
    %293 = vmatpush1.bf16.msra.mxu0 %v226
    %294 = vmatprep.subr.bf16.mxu0 0
    %295 = vmatpush1.bf16.msra.mxu0 %v227
    %296 = vmatprep.subr.bf16.mxu0 0
    %297 = vmatpush1.bf16.msra.mxu0 %v228
    %298 = vmatprep.subr.bf16.mxu0 0
    %299 = vmatpush1.bf16.msra.mxu0 %v229
    %300 = vmatprep.mubr.bf16.mxu0 %v108
    %301 = vmatmul.mubr.bf16.gmra.mrb[0].mxu0 %v101
    %v302 = vpop.f32.mrb[0].mxu0
    %v303 = vadd.f32 %v84, %v302
    %v304 = vpop.f32.mrb[0].mxu0
    %v305 = vpop.f32.mrb[0].mxu0
    %v306 = vpop.f32.mrb[0].mxu0
    %307 = vdwg.mxu0
    %308 = vmatprep.subr.bf16.mxu0 0
    %309 = vmatpush1.bf16.msra.mxu0 %v230
    %310 = vmatprep.subr.bf16.mxu0 0
    %311 = vmatpush1.bf16.msra.mxu0 %v231
    %312 = vmatprep.subr.bf16.mxu0 0
    %313 = vmatpush1.bf16.msra.mxu0 %v232
    %314 = vmatprep.subr.bf16.mxu0 0
    %315 = vmatpush1.bf16.msra.mxu0 %v233
    %316 = vmatprep.subr.bf16.mxu0 0
    %317 = vmatpush1.bf16.msra.mxu0 %v234
    %318 = vmatprep.subr.bf16.mxu0 0
    %319 = vmatpush1.bf16.msra.mxu0 %v235
    %320 = vmatprep.subr.bf16.mxu0 0
    %321 = vmatpush1.bf16.msra.mxu0 %v236
    %322 = vmatprep.subr.bf16.mxu0 0
    %323 = vmatpush1.bf16.msra.mxu0 %v237
    %324 = vmatprep.subr.bf16.mxu0 0
    %325 = vmatpush1.bf16.msra.mxu0 %v238
    %326 = vmatprep.subr.bf16.mxu0 0
    %327 = vmatpush1.bf16.msra.mxu0 0
    %328 = vmatprep.subr.bf16.mxu0 0
    %329 = vmatpush1.bf16.msra.mxu0 0
    %330 = vmatprep.subr.bf16.mxu0 0
    %331 = vmatpush1.bf16.msra.mxu0 0
    %332 = vmatprep.subr.bf16.mxu0 0
    %333 = vmatpush1.bf16.msra.mxu0 0
    %334 = vmatprep.subr.bf16.mxu0 0
    %335 = vmatpush1.bf16.msra.mxu0 0
    %336 = vmatprep.subr.bf16.mxu0 0
    %337 = vmatpush1.bf16.msra.mxu0 0
    %338 = vmatprep.subr.bf16.mxu0 0
    %339 = vmatpush1.bf16.msra.mxu0 0
    %340 = vmatprep.mubr.bf16.mxu0 %v266
    %341 = vmatmul.mubr.bf16.gmra.mrb[0].mxu0 %v109
    %v342 = vpop.f32.mrb[0].mxu0
    %v343 = vadd.f32 %v303, %v342
    %v344 = vpop.f32.mrb[0].mxu0
    %v345 = vpop.f32.mrb[0].mxu0
    %v346 = vpop.f32.mrb[0].mxu0
    %347 = vdwg.mxu0
    %v348 = vmax.f32 %v343, 0.0
    %v349 = vpack.c.bf16 %v348, %v348
    %v350 = vld [vmem:[%s3] sm:$0xf]
    %v351 = vld [vmem:[%s3 + $0x4] sm:$0xf]
    %v352 = vld [vmem:[%s3 + $0x8] sm:$0xf]
    %v353 = vld [vmem:[%s3 + $0xc] sm:$0xf]
    %v354 = vld [vmem:[%s3 + $0x10] sm:$0xf]
    %v355 = vld [vmem:[%s3 + $0x14] sm:$0xf]
    %v356 = vld [vmem:[%s3 + $0x18] sm:$0xf]
    %v357 = vld [vmem:[%s3 + $0x1c] sm:$0xf]
    %v358 = vld [vmem:[%s3 + $0x20] sm:$0xf]
    %v359 = vld [vmem:[%s3 + $0x24] sm:$0xf]
    %v360 = vld [vmem:[%s3 + $0x28] sm:$0xf]
    %v361 = vld [vmem:[%s3 + $0x2c] sm:$0xf]
    %v362 = vld [vmem:[%s3 + $0x30] sm:$0xf]
    %v363 = vld [vmem:[%s3 + $0x34] sm:$0xf]
    %v364 = vld [vmem:[%s3 + $0x38] sm:$0xf]
    %v365 = vld [vmem:[%s3 + $0x3c] sm:$0xf]
    %v366 = vld [vmem:[%s4] sm:$0x1]
    %v368 = vlaneseq
    %v369 = vshrl.u32 %v368, 7
    %v370 = vsub.s32 0, %v369
    %v371 = vrot.slane %v366, %v370
    %v389 = vunpack.c.l.b16 %v350
    %v390 = vunpack.c.l.b16 %v351
    %v391 = vunpack.c.l.b16 %v352
    %v392 = vunpack.c.l.b16 %v353
    %v393 = vunpack.c.l.b16 %v354
    %v394 = vunpack.c.l.b16 %v355
    %v395 = vunpack.c.l.b16 %v356
    %v396 = vunpack.c.l.b16 %v357
    %v397 = vunpack.c.l.b16 %v358
    %v398 = vunpack.c.l.b16 %v359
    %v399 = vunpack.c.l.b16 %v360
    %v400 = vunpack.c.l.b16 %v361
    %v401 = vunpack.c.l.b16 %v362
    %v402 = vunpack.c.l.b16 %v363
    %v403 = vunpack.c.l.b16 %v364
    %v404 = vunpack.c.l.b16 %v365
    %v405 = vpack.c.b16 %v390, %v389
    %v406 = vpack.c.b16 %v392, %v391
    %v407 = vpack.c.b16 %v394, %v393
    %v408 = vpack.c.b16 %v396, %v395
    %v409 = vpack.c.b16 %v398, %v397
    %v410 = vpack.c.b16 %v400, %v399
    %v411 = vpack.c.b16 %v402, %v401
    %v412 = vpack.c.b16 %v404, %v403
    %421 = vmatprep.subr.bf16.mxu0 0
    %422 = vmatpush1.bf16.msra.mxu0 %v405
    %423 = vmatprep.subr.bf16.mxu0 0
    %424 = vmatpush1.bf16.msra.mxu0 %v406
    %425 = vmatprep.subr.bf16.mxu0 0
    %426 = vmatpush1.bf16.msra.mxu0 %v407
    %427 = vmatprep.subr.bf16.mxu0 0
    %428 = vmatpush1.bf16.msra.mxu0 %v408
    %429 = vmatprep.subr.bf16.mxu0 0
    %430 = vmatpush1.bf16.msra.mxu0 %v409
    %431 = vmatprep.subr.bf16.mxu0 0
    %432 = vmatpush1.bf16.msra.mxu0 %v410
    %433 = vmatprep.subr.bf16.mxu0 0
    %434 = vmatpush1.bf16.msra.mxu0 %v411
    %435 = vmatprep.subr.bf16.mxu0 0
    %436 = vmatpush1.bf16.msra.mxu0 %v412
    %437 = vmatprep.subr.bf16.mxu0 0
    %438 = vmatpush1.bf16.msra.mxu0 0
    %439 = vmatprep.subr.bf16.mxu0 0
    %440 = vmatpush1.bf16.msra.mxu0 0
    %441 = vmatprep.subr.bf16.mxu0 0
    %442 = vmatpush1.bf16.msra.mxu0 0
    %443 = vmatprep.subr.bf16.mxu0 0
    %444 = vmatpush1.bf16.msra.mxu0 0
    %445 = vmatprep.subr.bf16.mxu0 0
    %446 = vmatpush1.bf16.msra.mxu0 0
    %447 = vmatprep.subr.bf16.mxu0 0
    %448 = vmatpush1.bf16.msra.mxu0 0
    %449 = vmatprep.subr.bf16.mxu0 0
    %450 = vmatpush1.bf16.msra.mxu0 0
    %451 = vmatprep.subr.bf16.mxu0 0
    %452 = vmatpush1.bf16.msra.mxu0 0
    %453 = vmatprep.mubr.bf16.mxu0 0
    %454 = vmatmul.mubr.bf16.gmra.mrb[0].mxu0 %v349
    %v455 = vpop.f32.mrb[0].mxu0
    %v456 = vadd.f32 %v371, %v455
    %v457 = vpop.f32.mrb[0].mxu0
    %v458 = vpop.f32.mrb[0].mxu0
    %v459 = vpop.f32.mrb[0].mxu0
    %460 = vdwg.mxu0
    %v461 = vmax.f32 %v456, 0.0
    %v462 = vpack.c.bf16 %v461, %v461
    %v463 = vld [vmem:[%s5] sm:$0xf]
    %v464 = vld [vmem:[%s5 + $0x4] sm:$0xf]
    %v465 = vld [vmem:[%s5 + $0x8] sm:$0xf]
    %v466 = vld [vmem:[%s5 + $0xc] sm:$0xf]
    %v467 = vld [vmem:[%s5 + $0x10] sm:$0xf]
    %v468 = vld [vmem:[%s5 + $0x14] sm:$0xf]
    %v469 = vld [vmem:[%s5 + $0x18] sm:$0xf]
    %v470 = vld [vmem:[%s5 + $0x1c] sm:$0xf]
    %v471 = vld [vmem:[%s5 + $0x20] sm:$0xf]
    %v472 = vld [vmem:[%s5 + $0x24] sm:$0xf]
    %v473 = vld [vmem:[%s5 + $0x28] sm:$0xf]
    %v474 = vld [vmem:[%s5 + $0x2c] sm:$0xf]
    %v475 = vld [vmem:[%s5 + $0x30] sm:$0xf]
    %v476 = vld [vmem:[%s5 + $0x34] sm:$0xf]
    %v477 = vld [vmem:[%s5 + $0x38] sm:$0xf]
    %v478 = vld [vmem:[%s5 + $0x3c] sm:$0xf]
    %v479 = vld [vmem:[%s6] sm:$0x1]
    %v481 = vlaneseq
    %v482 = vshrl.u32 %v481, 7
    %v483 = vsub.s32 0, %v482
    %v484 = vrot.slane %v479, %v483
    %v502 = vunpack.c.l.b16 %v463
    %v503 = vunpack.c.l.b16 %v464
    %v504 = vunpack.c.l.b16 %v465
    %v505 = vunpack.c.l.b16 %v466
    %v506 = vunpack.c.l.b16 %v467
    %v507 = vunpack.c.l.b16 %v468
    %v508 = vunpack.c.l.b16 %v469
    %v509 = vunpack.c.l.b16 %v470
    %v510 = vunpack.c.l.b16 %v471
    %v511 = vunpack.c.l.b16 %v472
    %v512 = vunpack.c.l.b16 %v473
    %v513 = vunpack.c.l.b16 %v474
    %v514 = vunpack.c.l.b16 %v475
    %v515 = vunpack.c.l.b16 %v476
    %v516 = vunpack.c.l.b16 %v477
    %v517 = vunpack.c.l.b16 %v478
    %v518 = vpack.c.b16 %v503, %v502
    %v519 = vpack.c.b16 %v505, %v504
    %v520 = vpack.c.b16 %v507, %v506
    %v521 = vpack.c.b16 %v509, %v508
    %v522 = vpack.c.b16 %v511, %v510
    %v523 = vpack.c.b16 %v513, %v512
    %v524 = vpack.c.b16 %v515, %v514
    %v525 = vpack.c.b16 %v517, %v516
    %534 = vmatprep.subr.bf16.mxu0 0
    %535 = vmatpush1.bf16.msra.mxu0 %v518
    %536 = vmatprep.subr.bf16.mxu0 0
    %537 = vmatpush1.bf16.msra.mxu0 %v519
    %538 = vmatprep.subr.bf16.mxu0 0
    %539 = vmatpush1.bf16.msra.mxu0 %v520
    %540 = vmatprep.subr.bf16.mxu0 0
    %541 = vmatpush1.bf16.msra.mxu0 %v521
    %542 = vmatprep.subr.bf16.mxu0 0
    %543 = vmatpush1.bf16.msra.mxu0 %v522
    %544 = vmatprep.subr.bf16.mxu0 0
    %545 = vmatpush1.bf16.msra.mxu0 %v523
    %546 = vmatprep.subr.bf16.mxu0 0
    %547 = vmatpush1.bf16.msra.mxu0 %v524
    %548 = vmatprep.subr.bf16.mxu0 0
    %549 = vmatpush1.bf16.msra.mxu0 %v525
    %550 = vmatprep.subr.bf16.mxu0 0
    %551 = vmatpush1.bf16.msra.mxu0 0
    %552 = vmatprep.subr.bf16.mxu0 0
    %553 = vmatpush1.bf16.msra.mxu0 0
    %554 = vmatprep.subr.bf16.mxu0 0
    %555 = vmatpush1.bf16.msra.mxu0 0
    %556 = vmatprep.subr.bf16.mxu0 0
    %557 = vmatpush1.bf16.msra.mxu0 0
    %558 = vmatprep.subr.bf16.mxu0 0
    %559 = vmatpush1.bf16.msra.mxu0 0
    %560 = vmatprep.subr.bf16.mxu0 0
    %561 = vmatpush1.bf16.msra.mxu0 0
    %562 = vmatprep.subr.bf16.mxu0 0
    %563 = vmatpush1.bf16.msra.mxu0 0
    %564 = vmatprep.subr.bf16.mxu0 0
    %565 = vmatpush1.bf16.msra.mxu0 0
    %566 = vmatprep.mubr.bf16.mxu0 0
    %567 = vmatmul.mubr.bf16.gmra.mrb[0].mxu0 %v462
    %v568 = vpop.f32.mrb[0].mxu0
    %v569 = vadd.f32 %v484, %v568
    %v570 = vpop.f32.mrb[0].mxu0
    %v571 = vpop.f32.mrb[0].mxu0
    %v572 = vpop.f32.mrb[0].mxu0
    %573 = vdwg.mxu0
    %574 = vst [vmem:[#allocation2] sm:$0x3] %v569
    // Predicated region
    $region30: #{simple_cnn_forward.5} parent=1 // pred_check
      _
    $region31: #{simple_cnn_forward.5} parent=1 // pred_check_branch
      %576 = sbr.rel (0) target = $region33
    $region32: #{simple_cnn_forward.5} parent=1 // pred_region
      %s578 = ssub.s32 32, 32
      %579 = vsyncadd [#allocation3], %s578
      %s581 = sshll.u32 [#allocation2], 4
      %s582 = int_to_ptr.vmem [resolvable:$true] %s581
      %584 = dma.vmem_to_hbm [thread:$0]  %s582, 32, %s7, [#allocation3]
    $region33: #{simple_cnn_forward.5} parent=1 // pred_fallthru
      _
    // Predicated region
    $region34: #{simple_cnn_forward.5} parent=1 // pred_check
      _
    $region35: #{simple_cnn_forward.5} parent=1 // pred_check_branch
      %586 = sbr.rel (0) target = $region37
    $region36: #{simple_cnn_forward.5} parent=1 // pred_region
      %587 = dma.done [#allocation3], 32
    $region37: #{simple_cnn_forward.5} parent=1 // pred_fallthru
      _
    %588 = vsyncpa [#allocation3], 1

</llo_original>
